<compile_context>
chip_gen: v7x
topology: tpu7x:2x2x1
jax: 0.10.0
libtpu: 0.0.40
codegen_flags: <defaults>
</compile_context>

<pallas_src>
import math

import jax
import jax.numpy as jnp
from jax.experimental import pallas as pl
from jax.experimental.pallas import tpu as pltpu


def rope_kernel(pos_ref, tp_ref, rep_ref, out_ref):
    # pos_ref: (tR, 1)   f32  -- positions (sublane-major)
    # tp_ref:  (2, D)    f32  -- row 0: theta[j] (= distinct freq f_{j//2});
    #                            row 1: phase (0 on even cols, pi/2 on odd cols)
    # rep_ref: (D, 2D)   f32  -- 0/1 lane-replication matrix (out lane l <- col 2*(l//4)+(l%2))
    # out_ref: (tR, 2D)  f32 / bf16
    theta = tp_ref[0:1, :]                       # (1, D)
    phase = tp_ref[1:2, :]                       # (1, D)
    angles = pos_ref[...] * theta - phase        # (tR, D), pure VPU (lane splat of pos)
    # even cols: cos(pos * f_k); odd cols: cos(x - pi/2) == sin(pos * f_k)
    half = jnp.cos(angles)                       # (tR, D) -- single EUP pass, HALF width
    # Expand D distinct cos/sin lanes to the 2D interleaved layout on the idle MXU.
    full = jnp.dot(half, rep_ref[...],
                   preferred_element_type=jnp.float32,
                   precision=jax.lax.Precision.HIGHEST)      # exact 0/1 selection
    out_ref[...] = full.astype(out_ref.dtype)


def _choose_row_tile(n_rows, two_d, target_block_bytes=8 * 1024 * 1024):
    """Row tile: multiple of 8, output block ~target_block_bytes of f32."""
    rows = max(8, target_block_bytes // (two_d * 4))
    rows = max(8, (rows // 8) * 8)
    return int(n_rows) if rows >= n_rows else int(rows)


def rope_positional_encoding(positions, d_model, base=10000.0, *, seq_tile=None,
                             out_dtype=jnp.float32):
    """positions: (...,) -> (..., 2*d_model) with cos/sin interleaved."""
    assert d_model % 2 == 0, "d_model must be even (standard for RoPE)"
    positions = positions.astype(jnp.float32)
    orig_shape = positions.shape
    N = int(math.prod(orig_shape))
    two_d = 2 * d_model

    if seq_tile is None:
        tR = _choose_row_tile(N, two_d)
    else:
        tR = min(int(seq_tile), N)
        if tR < N:
            # (8,128) constraint: non-full blocks must have sublane dim % 8 == 0.
            tR = max(8, (tR // 8) * 8)

    # theta[j] = base ** (-2 * (j // 2) / d_model); phase 0 / pi/2 alternating.
    j = jnp.arange(d_model)
    theta = jnp.asarray(base, jnp.float32) ** (
        -2.0 * (j // 2).astype(jnp.float32) / d_model)
    phase = jnp.tile(jnp.array([0.0, math.pi / 2.0], jnp.float32), d_model // 2)
    tp = jnp.stack([theta, phase], axis=0)                      # (2, D)

    # Lane-replication matrix: output lane l sources half-tile column 2*(l//4)+(l%2).
    lanes = jnp.arange(two_d)
    src = 2 * (lanes // 4) + (lanes % 2)
    rep = (jnp.arange(d_model)[:, None] == src[None, :]).astype(jnp.float32)  # (D, 2D)

    pos2 = positions.reshape(N, 1)                              # rows in the sublane dim
    grid = (pl.cdiv(N, tR),)

    out_bytes = N * two_d * jnp.dtype(out_dtype).itemsize
    cost = pl.CostEstimate(
        flops=2 * N * d_model + 2 * N * d_model * two_d,        # VPU mul/sub + MXU replication
        transcendentals=N * d_model,                            # one cos per DISTINCT lane
        bytes_accessed=4 * (N + 2 * d_model + d_model * two_d) + out_bytes,
    )

    out = pl.pallas_call(
        rope_kernel,
        out_shape=jax.ShapeDtypeStruct((N, two_d), out_dtype),
        grid=grid,
        in_specs=[
            pl.BlockSpec((tR, 1), lambda s: (s, 0)),             # positions
            pl.BlockSpec((2, d_model), lambda s: (0, 0)),        # theta + phase
            pl.BlockSpec((d_model, two_d), lambda s: (0, 0)),    # replication matrix
        ],
        out_specs=pl.BlockSpec((tR, two_d), lambda s: (s, 0)),
        compiler_params=pltpu.CompilerParams(
            dimension_semantics=("parallel",),
            vmem_limit_bytes=48 * 1024 * 1024,
        ),
        cost_estimate=cost,
    )(pos2, tp, rep)
    return out.reshape(*orig_shape, two_d)


def rope_reference(positions, d_model, base=10000.0):
    """Pure-JAX mirror of the PyTorch forward (stack + flatten)."""
    i = jnp.arange(d_model)
    theta = jnp.asarray(base, jnp.float32) ** (
        -2.0 * (i // 2).astype(jnp.float32) / d_model)
    angles = positions[..., None].astype(jnp.float32) * theta          # (..., D)
    stacked = jnp.stack([jnp.cos(angles), jnp.sin(angles)], axis=-1)   # (..., D, 2)
    return stacked.reshape(*angles.shape[:-1], 2 * d_model)


if __name__ == "__main__":
    d_model = 64          # 2*d_model = 128 -> lane-dense output last dim
    B, S = 2, 256

    key = jax.random.PRNGKey(0)
    # Arbitrary (possibly fractional) positions, as the RoPE module allows.
    positions = jax.random.uniform(key, (B, S), dtype=jnp.float32) * 100.0

    # seq_tile=128 -> flattened grid (4,): exercises the tiled/pipelined path at small scale.
    out = rope_positional_encoding(positions, d_model, seq_tile=128)
    out = jax.block_until_ready(out)

    ref = rope_reference(positions, d_model)
    assert out.shape == (B, S, 2 * d_model), out.shape
    # sin(x) = cos(x - pi/2) rewrite adds <= ~1e-5 abs error at |angle| <= 100;
    # the 0/1 MXU replication (precision=HIGHEST) is numerically negligible.
    assert jnp.allclose(out, ref, atol=1e-4, rtol=1e-4), "mismatch vs reference"

    print("KERNEL_OK")
</pallas_src>

<mosaic_0001>
module attributes {stable_mosaic.version = 11 : i64} {
  func.func @rope_kernel(%arg0: i32, %arg1: memref<128x1xf32, #tpu.memory_space<vmem>>, %arg2: memref<2x64xf32, #tpu.memory_space<vmem>>, %arg3: memref<64x128xf32, #tpu.memory_space<vmem>>, %arg4: memref<128x128xf32, #tpu.memory_space<vmem>>) attributes {dimension_semantics = [#tpu.dimension_semantics<parallel>], iteration_bounds = array<i64: 4>, scalar_prefetch = 0 : i64, scratch_operands = 0 : i64, tpu.core_type = #tpu.core_type<tc>, window_params = [{transform_indices = @transform_0, window_bounds = array<i64: 128, 1>}, {pipeline_mode = #tpu.pipeline_mode<synchronous>, transform_indices = @transform_1, window_bounds = array<i64: 2, 64>}, {pipeline_mode = #tpu.pipeline_mode<synchronous>, transform_indices = @transform_2, window_bounds = array<i64: 64, 128>}, {transform_indices = @transform_3, window_bounds = array<i64: 128, 128>}]} {
    %c0 = arith.constant 0 : index
    %c0_0 = arith.constant 0 : index
    %0 = vector.load %arg2[%c0, %c0_0] : memref<2x64xf32, #tpu.memory_space<vmem>>, vector<1x64xf32>
    %c1 = arith.constant 1 : index
    %c0_1 = arith.constant 0 : index
    %1 = vector.load %arg2[%c1, %c0_1] : memref<2x64xf32, #tpu.memory_space<vmem>>, vector<1x64xf32>
    %c0_2 = arith.constant 0 : index
    %c0_3 = arith.constant 0 : index
    %2 = vector.load %arg1[%c0_2, %c0_3] : memref<128x1xf32, #tpu.memory_space<vmem>>, vector<128x1xf32>
    %3 = vector.broadcast %2 : vector<128x1xf32> to vector<128x64xf32>
    %4 = vector.broadcast %0 : vector<1x64xf32> to vector<128x64xf32>
    %5 = arith.mulf %3, %4 : vector<128x64xf32>
    %6 = vector.broadcast %1 : vector<1x64xf32> to vector<128x64xf32>
    %7 = arith.subf %5, %6 : vector<128x64xf32>
    %8 = math.cos %7 : vector<128x64xf32>
    %c0_4 = arith.constant 0 : index
    %c0_5 = arith.constant 0 : index
    %9 = vector.load %arg3[%c0_4, %c0_5] : memref<64x128xf32, #tpu.memory_space<vmem>>, vector<64x128xf32>
    %cst = arith.constant dense<0.000000e+00> : vector<128x128xf32>
    %10 = tpu.matmul %8, %9, %cst {dimension_numbers = #tpu.dot_dimension_numbers<[1], [0], [0], [1], [0, 0, 1, 1], [], []>, precision = #tpu.contract_precision<fp32>} : vector<128x64xf32>, vector<64x128xf32>, vector<128x128xf32> -> vector<128x128xf32>
    %c0_6 = arith.constant 0 : index
    %c0_7 = arith.constant 0 : index
    %11 = vector.load %arg4[%c0_6, %c0_7] : memref<128x128xf32, #tpu.memory_space<vmem>>, vector<128x128xf32>
    tpu.vector_store %arg4[%c0_6, %c0_7], %10 {strides = array<i32>} : memref<128x128xf32, #tpu.memory_space<vmem>>, vector<128x128xf32>,
    return
  }
  func.func @transform_0(%arg0: i32) -> (i32, i32) {
    %c0_i32 = arith.constant 0 : i32
    %c0_i32_0 = arith.constant 0 : i32
    return %arg0, %c0_i32 : i32, i32
  }
  func.func @transform_1(%arg0: i32) -> (i32, i32) {
    %c0_i32 = arith.constant 0 : i32
    %c0_i32_0 = arith.constant 0 : i32
    %c0_i32_1 = arith.constant 0 : i32
    return %c0_i32, %c0_i32_0 : i32, i32
  }
  func.func @transform_2(%arg0: i32) -> (i32, i32) {
    %c0_i32 = arith.constant 0 : i32
    %c0_i32_0 = arith.constant 0 : i32
    %c0_i32_1 = arith.constant 0 : i32
    return %c0_i32, %c0_i32_0 : i32, i32
  }
  func.func @transform_3(%arg0: i32) -> (i32, i32) {
    %c0_i32 = arith.constant 0 : i32
    %c0_i32_0 = arith.constant 0 : i32
    return %arg0, %c0_i32 : i32, i32
  }
}

</mosaic_0001>

<llo_original>
// kernel: tpu_custom_call.1
$region0: #{tpu_custom_call.1}
  #allocation0 [shape = 'u32[]', space=smem, size = 0x4, offset = 0x4, fixed_abs, tag = 'smem constant byte address 0x4 - core index']
  #allocation1 [shape = 'u32[144,128]{1,0:T(1,128)}', space=vmem, size = 0x12000, scoped, tag = 'internal scratch']
  %s0 = inlined_call_operand.vmem [shape: f32[512,1], index: 0, kind: input, shape index: {}]
  %s1 = inlined_call_operand.vmem [shape: f32[2,64], index: 1, kind: input, shape index: {}]
  %s2 = inlined_call_operand.vmem [shape: f32[64,128], index: 2, kind: input, shape index: {}]
  %s3 = inlined_call_operand.hbm [shape: f32[512,128], index: 3, kind: output, shape index: {}]
  %s4 = sld [smem:[#allocation0]]
  $region45: #{tpu_custom_call.1} parent=0
    _
  %s6 = ssub.s32 1, %s4
  %s7 = scalar_select 0, %s6, %s4
  $region1: #{tpu_custom_call.1} parent=0
    #allocation2 [shape = 'u8[131072]{0}', space=vmem, size = 0x20000, scoped, tag = 'output window, operand 0']
    #allocation3 [shape = 's32[2]{0}', space=sflag, size = 0x8, scoped, tag = 'scoped memory for tpu_custom_call.1']
    %8 = vsyncpa [#allocation3], 0
    %s9 = scalar_lea.sflag [#allocation3], 1
    %10 = vsyncpa %s9, 0
    loop: start=0, step=1, limit=6
    $region2: #{tpu_custom_call.1} parent=1 // loop_pre_header
      _
    $region3: #{tpu_custom_call.1} parent=1 // loop_header
      %s12 = sphi 0, %s16
      %p13 = scmp.ge.s32.totalorder %s12, 6
      %s22 = sphi 0, %s24
      %s25 = sphi 0, %s22
      %s26 = sphi 0, %s25
      %s42 = sphi 0, %s26
      %s46 = sphi 0, %s46
      %s48 = sphi 0, %s46
      %s49 = sphi 0, %s48
      %s63 = sphi 0, %s49
      %s67 = sphi 0, %s67
      %s69 = sphi 0, %s67
      %s70 = sphi 0, %s69
      %s84 = sphi 0, %s70
      %s90 = sphi 0, %s92
      %s93 = sphi 0, %s90
      %s94 = sphi 0, %s93
      %s110 = sphi 0, %s94
    $region4: #{tpu_custom_call.1} parent=1 // loop_header_branch
      %15 = sbr.rel (%p13) target = $region8
    $region5: #{tpu_custom_call.1} parent=1 // loop_body
      %s17 = ssub.s32 %s12, 1
      %s18 = ssub.s32 %s12, 2
      %s19 = sadd.s32 %s12, 1
      %s20 = ssub.s32 %s12, %s19
      %p21 = scmp.eq.s32.totalorder %s20, 0
      %s23 = sadd.s32 %s22, 1
      %s24 = scalar_select %p21, %s22, %s23
      %p27 = pneg %p21
      %p28 = scmp.eq.s32.totalorder %s12, 3
      %p29 = por %p27, %p28
      %p30 = scmp.ne.s32.totalorder %s22, %s25
      %p31 = scmp.eq.s32.totalorder %s12, 0
      %p32 = por %p30, %p31
      %p33 = scmp.ne.s32.totalorder %s22, %s25
      %p34 = scmp.eq.s32.totalorder %s17, 3
      %p35 = por %p33, %p34
      %p36 = scmp.ne.s32.totalorder %s25, %s26
      %p37 = scmp.eq.s32.totalorder %s17, 0
      %p38 = por %p36, %p37
      %p39 = scmp.ne.s32.totalorder %s25, %s26
      %p40 = scmp.eq.s32.totalorder %s18, 3
      %p41 = por %p39, %p40
      %p43 = scmp.ne.s32.totalorder %s26, %s42
      %p44 = scmp.eq.s32.totalorder %s18, 0
      %p45 = por %p43, %p44
      %s47 = sadd.s32 %s46, 1
      %p50 = scmp.eq.s32.totalorder %s12, 3
      %p51 = scmp.ne.s32.totalorder %s46, %s48
      %p52 = scmp.eq.s32.totalorder %s12, 0
      %p53 = por %p51, %p52
      %p54 = scmp.ne.s32.totalorder %s46, %s48
      %p55 = scmp.eq.s32.totalorder %s17, 3
      %p56 = por %p54, %p55
      %p57 = scmp.ne.s32.totalorder %s48, %s49
      %p58 = scmp.eq.s32.totalorder %s17, 0
      %p59 = por %p57, %p58
      %p60 = scmp.ne.s32.totalorder %s48, %s49
      %p61 = scmp.eq.s32.totalorder %s18, 3
      %p62 = por %p60, %p61
      %p64 = scmp.ne.s32.totalorder %s49, %s63
      %p65 = scmp.eq.s32.totalorder %s18, 0
      %p66 = por %p64, %p65
      %s68 = sadd.s32 %s67, 1
      %p71 = scmp.eq.s32.totalorder %s12, 3
      %p72 = scmp.ne.s32.totalorder %s67, %s69
      %p73 = scmp.eq.s32.totalorder %s12, 0
      %p74 = por %p72, %p73
      %p75 = scmp.ne.s32.totalorder %s67, %s69
      %p76 = scmp.eq.s32.totalorder %s17, 3
      %p77 = por %p75, %p76
      %p78 = scmp.ne.s32.totalorder %s69, %s70
      %p79 = scmp.eq.s32.totalorder %s17, 0
      %p80 = por %p78, %p79
      %p81 = scmp.ne.s32.totalorder %s69, %s70
      %p82 = scmp.eq.s32.totalorder %s18, 3
      %p83 = por %p81, %p82
      %p85 = scmp.ne.s32.totalorder %s70, %s84
      %p86 = scmp.eq.s32.totalorder %s18, 0
      %p87 = por %p85, %p86
      %s88 = ssub.s32 %s12, %s19
      %p89 = scmp.eq.s32.totalorder %s88, 0
      %s91 = sadd.s32 %s90, 1
      %s92 = scalar_select %p89, %s90, %s91
      %p95 = pneg %p89
      %p96 = scmp.eq.s32.totalorder %s12, 3
      %p97 = por %p95, %p96
      %p98 = scmp.ne.s32.totalorder %s90, %s93
      %p99 = scmp.eq.s32.totalorder %s12, 0
      %p100 = por %p98, %p99
      %p101 = scmp.ne.s32.totalorder %s90, %s93
      %p102 = scmp.eq.s32.totalorder %s17, 3
      %p103 = por %p101, %p102
      %p104 = scmp.ne.s32.totalorder %s93, %s94
      %p105 = scmp.eq.s32.totalorder %s17, 0
      %p106 = por %p104, %p105
      %p107 = scmp.ne.s32.totalorder %s93, %s94
      %p108 = scmp.eq.s32.totalorder %s18, 3
      %p109 = por %p107, %p108
      %p111 = scmp.ne.s32.totalorder %s94, %s110
      %p112 = scmp.eq.s32.totalorder %s18, 0
      %p113 = por %p111, %p112
      %p114 = scmp.le.s32.totalorder 1, %s12
      %p115 = scmp.lt.s32.totalorder %s12, 5
      %p116 = pnand %p114, %p115
      %p117 = pneg %p116
      // Predicated region
      $region9: #{tpu_custom_call.1} parent=5 // pred_check
        _
      $region10: #{tpu_custom_call.1} parent=5 // pred_check_branch
        %119 = sbr.rel (%p116) target = $region12
      $region11: #{tpu_custom_call.1} parent=5 // pred_region
        %s120 = ssub.s32 %s12, 1
        // Predicated region
        $region13: #{tpu_custom_call.1} parent=11 // pred_check
          %p121 = pneg %p59
        $region14: #{tpu_custom_call.1} parent=11 // pred_check_branch
          %123 = sbr.rel (%p121) target = $region16
        $region15: #{tpu_custom_call.1} parent=11 // pred_region
          _
        $region16: #{tpu_custom_call.1} parent=11 // pred_fallthru
          _
        // Predicated region
        $region17: #{tpu_custom_call.1} parent=11 // pred_check
          %p124 = pneg %p80
        $region18: #{tpu_custom_call.1} parent=11 // pred_check_branch
          %126 = sbr.rel (%p124) target = $region20
        $region19: #{tpu_custom_call.1} parent=11 // pred_region
          _
        $region20: #{tpu_custom_call.1} parent=11 // pred_fallthru
          _
      $region12: #{tpu_custom_call.1} parent=5 // pred_fallthru
        _
      %p127 = scmp.lt.s32.totalorder %s12, 4
      // Predicated region
      $region21: #{tpu_custom_call.1} parent=5 // pred_check
        %p128 = pneg %p127
      $region22: #{tpu_custom_call.1} parent=5 // pred_check_branch
        %130 = sbr.rel (%p128) target = $region24
      $region23: #{tpu_custom_call.1} parent=5 // pred_region
        // Predicated region
        $region25: #{tpu_custom_call.1} parent=23 // pred_check
          %p131 = pneg %p32
        $region26: #{tpu_custom_call.1} parent=23 // pred_check_branch
          %133 = sbr.rel (%p131) target = $region28
        $region27: #{tpu_custom_call.1} parent=23 // pred_region
          %s134 = smul.u32 16, %s12
          %p135 = scmp.lt.s32.totalorder %s134, 63
          %s136 = scalar_select %p135, %s134, 63
          %s137 = smul.addr %s136, 8
          %s138 = scalar_lea.vmem %s0, %s137
          %s139 = smul.u32 16, %s12
        $region28: #{tpu_custom_call.1} parent=23 // pred_fallthru
          _
      $region24: #{tpu_custom_call.1} parent=5 // pred_fallthru
        _
      %p140 = scmp.le.s32.totalorder 1, %s12
      %p141 = scmp.lt.s32.totalorder %s12, 5
      %p142 = pnand %p140, %p141
      %p143 = pneg %p142
      // Predicated region
      $region29: #{tpu_custom_call.1} parent=5 // pred_check
        _
      $region30: #{tpu_custom_call.1} parent=5 // pred_check_branch
        %145 = sbr.rel (%p142) target = $region32
      $region31: #{tpu_custom_call.1} parent=5 // pred_region
        %s146 = ssub.s32 %s12, 1
        %s147 = smul.u32 16, %s17
        %p148 = scmp.lt.s32.totalorder %s147, 63
        %s149 = scalar_select %p148, %s147, 63
        %s150 = smul.addr %s149, 8
        %s151 = scalar_lea.vmem %s0, %s150
        %p152 = pneg %p38
        %p153 = pneg %p35
        %p154 = pneg %p59
        %p155 = pneg %p56
        %p156 = pneg %p80
        %p157 = pneg %p77
        %p158 = pneg %p106
        %p159 = pneg %p103
        %s160 = sand.u32 %s93, 1
        %s161 = scalar_lea.sflag [#allocation3], %s160
        %s162 = sand.u32 %s93, 1
        %s163 = smul.addr %s162, 128
        %s164 = scalar_lea.vmem [#allocation2], %s163
        %s165 = smul.u32 16, %s17
        %p166 = scmp.lt.s32.totalorder %s165, 63
        %s167 = scalar_select %p166, %s165, 63
        %s168 = smul.addr %s167, 8
        %s169 = scalar_lea.vmem %s0, %s168
        %s170 = smul.u32 16, %s17
        %s171 = smul.u32 16, %s17
        %v172 = vld [vmem:[%s1] sm:$0x1]
        %v173 = vld [vmem:[%s1 + $0x1] sm:$0x1]
        %v174 = vld [vmem:[%s169] sm:$0xff]
        %v175 = vld [vmem:[%s169 + $0x8] sm:$0xff]
        %v176 = vld [vmem:[%s169 + $0x10] sm:$0xff]
        %v177 = vld [vmem:[%s169 + $0x18] sm:$0xff]
        %v178 = vld [vmem:[%s169 + $0x20] sm:$0xff]
        %v179 = vld [vmem:[%s169 + $0x28] sm:$0xff]
        %v180 = vld [vmem:[%s169 + $0x30] sm:$0xff]
        %v181 = vld [vmem:[%s169 + $0x38] sm:$0xff]
        %v182 = vld [vmem:[%s169 + $0x40] sm:$0xff]
        %v183 = vld [vmem:[%s169 + $0x48] sm:$0xff]
        %v184 = vld [vmem:[%s169 + $0x50] sm:$0xff]
        %v185 = vld [vmem:[%s169 + $0x58] sm:$0xff]
        %v186 = vld [vmem:[%s169 + $0x60] sm:$0xff]
        %v187 = vld [vmem:[%s169 + $0x68] sm:$0xff]
        %v188 = vld [vmem:[%s169 + $0x70] sm:$0xff]
        %v189 = vld [vmem:[%s169 + $0x78] sm:$0xff]
        %191 = vset.pattern.permute.xlu0 0
        %192 = vperm.xlu0 %191, %v174
        %v193 = vpop.permute.xlu0 %192
        %196 = vset.pattern.permute.xlu0 0
        %197 = vperm.xlu0 %196, %v175
        %v198 = vpop.permute.xlu0 %197
        %201 = vset.pattern.permute.xlu0 0
        %202 = vperm.xlu0 %201, %v176
        %v203 = vpop.permute.xlu0 %202
        %206 = vset.pattern.permute.xlu0 0
        %207 = vperm.xlu0 %206, %v177
        %v208 = vpop.permute.xlu0 %207
        %211 = vset.pattern.permute.xlu0 0
        %212 = vperm.xlu0 %211, %v178
        %v213 = vpop.permute.xlu0 %212
        %216 = vset.pattern.permute.xlu0 0
        %217 = vperm.xlu0 %216, %v179
        %v218 = vpop.permute.xlu0 %217
        %221 = vset.pattern.permute.xlu0 0
        %222 = vperm.xlu0 %221, %v180
        %v223 = vpop.permute.xlu0 %222
        %226 = vset.pattern.permute.xlu0 0
        %227 = vperm.xlu0 %226, %v181
        %v228 = vpop.permute.xlu0 %227
        %231 = vset.pattern.permute.xlu0 0
        %232 = vperm.xlu0 %231, %v182
        %v233 = vpop.permute.xlu0 %232
        %236 = vset.pattern.permute.xlu0 0
        %237 = vperm.xlu0 %236, %v183
        %v238 = vpop.permute.xlu0 %237
        %241 = vset.pattern.permute.xlu0 0
        %242 = vperm.xlu0 %241, %v184
        %v243 = vpop.permute.xlu0 %242
        %246 = vset.pattern.permute.xlu0 0
        %247 = vperm.xlu0 %246, %v185
        %v248 = vpop.permute.xlu0 %247
        %251 = vset.pattern.permute.xlu0 0
        %252 = vperm.xlu0 %251, %v186
        %v253 = vpop.permute.xlu0 %252
        %256 = vset.pattern.permute.xlu0 0
        %257 = vperm.xlu0 %256, %v187
        %v258 = vpop.permute.xlu0 %257
        %261 = vset.pattern.permute.xlu0 0
        %262 = vperm.xlu0 %261, %v188
        %v263 = vpop.permute.xlu0 %262
        %266 = vset.pattern.permute.xlu0 0
        %267 = vperm.xlu0 %266, %v189
        %v268 = vpop.permute.xlu0 %267
        %v270 = vlaneseq
        %v271 = vshrl.u32 %v270, 7
        %v272 = vsub.s32 0, %v271
        %v273 = vrot.slane %v172, %v272
        %v274 = vmul.f32 %v193, %v273
        %v275 = vmul.f32 %v198, %v273
        %v276 = vmul.f32 %v203, %v273
        %v277 = vmul.f32 %v208, %v273
        %v278 = vmul.f32 %v213, %v273
        %v279 = vmul.f32 %v218, %v273
        %v280 = vmul.f32 %v223, %v273
        %v281 = vmul.f32 %v228, %v273
        %v282 = vmul.f32 %v233, %v273
        %v283 = vmul.f32 %v238, %v273
        %v284 = vmul.f32 %v243, %v273
        %v285 = vmul.f32 %v248, %v273
        %v286 = vmul.f32 %v253, %v273
        %v287 = vmul.f32 %v258, %v273
        %v288 = vmul.f32 %v263, %v273
        %v289 = vmul.f32 %v268, %v273
        %v290 = vlaneseq
        %v291 = vshrl.u32 %v290, 7
        %v292 = vsub.s32 0, %v291
        %v293 = vrot.slane %v173, %v292
        %v294 = vsub.f32 %v274, %v293
        %v295 = vsub.f32 %v275, %v293
        %v296 = vsub.f32 %v276, %v293
        %v297 = vsub.f32 %v277, %v293
        %v298 = vsub.f32 %v278, %v293
        %v299 = vsub.f32 %v279, %v293
        %v300 = vsub.f32 %v280, %v293
        %v301 = vsub.f32 %v281, %v293
        %v302 = vsub.f32 %v282, %v293
        %v303 = vsub.f32 %v283, %v293
        %v304 = vsub.f32 %v284, %v293
        %v305 = vsub.f32 %v285, %v293
        %v306 = vsub.f32 %v286, %v293
        %v307 = vsub.f32 %v287, %v293
        %v308 = vsub.f32 %v288, %v293
        %v309 = vsub.f32 %v289, %v293
        %v310 = vand.u32 2147483647, %v294
        %vm311 = vcmp.le.f32.partialorder %v310, 0.7853982
        %vm312 = vcmp.lt.s32.totalorder %v294, 0
        %v313 = vand.u32 %v294, 2139095040
        %v314 = vshrl.u32 %v313, 23
        %v315 = vsub.s32 %v314, 127
        %v316 = vand.u32 2147483647, %v294
        %v317 = vand.u32 %v316, 8388607
        %v318 = vor.u32 %v317, 8388608
        %v319 = vsub.s32 0, %v318
        %v320 = vadd.s32 %v315, 1
        %vm321 = vcmp.gt.s32.totalorder %v320, 0
        %v322 = vsel %vm321, %v320, 0
        %v323 = vshrl.u32 %v322, 5
        %v324 = vand.u32 %v322, 31
        %v325 = vsub.s32 32, %v324
        %v326 = vshrl.u32 683565275, %v325
        %v327 = vshll.u32 683565275, %v324
        %v328 = vshrl.u32 2475754826, %v325
        %v329 = vor.u32 %v327, %v328
        %v330 = vshll.u32 2475754826, %v324
        %v331 = vshrl.u32 2131351028, %v325
        %v332 = vor.u32 %v330, %v331
        %v333 = vshll.u32 2131351028, %v324
        %v334 = vshrl.u32 2102212464, %v325
        %v335 = vor.u32 %v333, %v334
        %v336 = vshll.u32 2102212464, %v324
        %v337 = vshrl.u32 920167782, %v325
        %v338 = vor.u32 %v336, %v337
        %v339 = vshll.u32 920167782, %v324
        %v340 = vshrl.u32 1326507024, %v325
        %v341 = vor.u32 %v339, %v340
        %vm342 = vcmp.lt.s32.totalorder %v323, 1
        %vm343 = vcmp.lt.s32.totalorder %v323, 2
        %vm344 = vcmp.lt.s32.totalorder %v323, 3
        %vm345 = vcmp.lt.s32.totalorder %v323, 4
        %v346 = vsel %vm342, %v326, %v329
        %v347 = vsel %vm345, %v335, 2102212464
        %v348 = vsel %vm344, %v332, %v347
        %v349 = vsel %vm343, %v346, %v348
        %v350 = vsel %vm342, %v329, %v332
        %v351 = vsel %vm345, %v338, 920167782
        %v352 = vsel %vm344, %v335, %v351
        %v353 = vsel %vm343, %v350, %v352
        %v354 = vsel %vm342, %v332, %v335
        %v355 = vsel %vm345, %v341, 1326507024
        %v356 = vsel %vm344, %v338, %v355
        %v357 = vsel %vm343, %v354, %v356
        %v358 = vshll.u32 %v318, 8
        %v359 = vmul.u32.u64.compose %v358, %v357
        %v360 = vextract.low.u32 %v359
        %v361 = vextract.high.u32 %v359
        %v362 = vmul.u32.u64.compose %v358, %v353
        %v363 = vextract.low.u32 %v362
        %v364 = vextract.high.u32 %v362
        %v365 = vmul.u32 %v358, %v349
        %v366 = vadd.s32 %v361, %v363
        %vm367 = vc.u32 %v361, %v363
        %v368 = vadd.s32 %v364, 1
        %v369 = vsel %vm367, %v368, %v364
        %v370 = vadd.s32 %v365, %v369
        %v371 = vadd.s32 %v370, 536870912
        %v372 = vshrl.u32 %v371, 30
        %v373 = vshll.u32 %v372, 30
        %v374 = vsub.s32 %v370, %v373
        %vm375 = vcmp.lt.s32.totalorder %v374, 0
        %v376 = vsub.s32 0, %v374
        %v377 = vsel %vm375, %v376, %v374
        %v378 = vclz %v377
        %v379 = vsub.s32 %v378, 2
        %vm380 = vcmp.gt.s32.totalorder 0, %v379
        %v381 = vsel %vm380, 0, %v379
        %v382 = vsub.s32 32, %v381
        %v383 = vshll.u32 %v374, %v381
        %v384 = vshrl.u32 %v366, %v382
        %v385 = vor.u32 %v383, %v384
        %v386 = vsub.s32 4294967266, %v381
        %v387 = vadd.s32 %v386, 127
        %v388 = vshll.u32 %v387, 23
        %v389 = vor.u32 4788187, %v388
        %v390 = vand.u32 2147483647, %v389
        %v392 = vcvt.s32.f32 %v385
        %v393 = vmul.f32 %v392, %v390
        %v394 = vxor.u32 %v393, 2147483648
        %v395 = vsel %vm312, %v394, %v393
        %v396 = vsub.s32 4, %v372
        %v397 = vsel %vm312, %v396, %v372
        %v398 = vsel %vm311, %v294, %v395
        %v399 = vsel %vm311, 0, %v397
        %v400 = vcosq.f32.pop %v398
        %v401 = vsinq.f32.pop %v398
        %vm402 = vweird.f32 %v294
        %v403 = vand.u32 %v399, 3
        %vm404 = vcmp.lt.s32.totalorder %v403, 2
        %vm405 = vcmp.eq.s32.totalorder %v403, 0
        %v406 = vxor.u32 %v401, 2147483648
        %v407 = vsel %vm405, %v400, %v406
        %vm408 = vcmp.eq.s32.totalorder %v403, 2
        %v409 = vxor.u32 %v400, 2147483648
        %v410 = vsel %vm408, %v409, %v401
        %v411 = vsel %vm404, %v407, %v410
        %v412 = vsel %vm402, nan, %v411
        %v413 = vand.u32 2147483647, %v295
        %vm414 = vcmp.le.f32.partialorder %v413, 0.7853982
        %vm415 = vcmp.lt.s32.totalorder %v295, 0
        %v416 = vand.u32 %v295, 2139095040
        %v417 = vshrl.u32 %v416, 23
        %v418 = vsub.s32 %v417, 127
        %v419 = vand.u32 2147483647, %v295
        %v420 = vand.u32 %v419, 8388607
        %v421 = vor.u32 %v420, 8388608
        %v422 = vsub.s32 0, %v421
        %v423 = vadd.s32 %v418, 1
        %vm424 = vcmp.gt.s32.totalorder %v423, 0
        %v425 = vsel %vm424, %v423, 0
        %v426 = vshrl.u32 %v425, 5
        %v427 = vand.u32 %v425, 31
        %v428 = vsub.s32 32, %v427
        %v429 = vshrl.u32 683565275, %v428
        %v430 = vshll.u32 683565275, %v427
        %v431 = vshrl.u32 2475754826, %v428
        %v432 = vor.u32 %v430, %v431
        %v433 = vshll.u32 2475754826, %v427
        %v434 = vshrl.u32 2131351028, %v428
        %v435 = vor.u32 %v433, %v434
        %v436 = vshll.u32 2131351028, %v427
        %v437 = vshrl.u32 2102212464, %v428
        %v438 = vor.u32 %v436, %v437
        %v439 = vshll.u32 2102212464, %v427
        %v440 = vshrl.u32 920167782, %v428
        %v441 = vor.u32 %v439, %v440
        %v442 = vshll.u32 920167782, %v427
        %v443 = vshrl.u32 1326507024, %v428
        %v444 = vor.u32 %v442, %v443
        %vm445 = vcmp.lt.s32.totalorder %v426, 1
        %vm446 = vcmp.lt.s32.totalorder %v426, 2
        %vm447 = vcmp.lt.s32.totalorder %v426, 3
        %vm448 = vcmp.lt.s32.totalorder %v426, 4
        %v449 = vsel %vm445, %v429, %v432
        %v450 = vsel %vm448, %v438, 2102212464
        %v451 = vsel %vm447, %v435, %v450
        %v452 = vsel %vm446, %v449, %v451
        %v453 = vsel %vm445, %v432, %v435
        %v454 = vsel %vm448, %v441, 920167782
        %v455 = vsel %vm447, %v438, %v454
        %v456 = vsel %vm446, %v453, %v455
        %v457 = vsel %vm445, %v435, %v438
        %v458 = vsel %vm448, %v444, 1326507024
        %v459 = vsel %vm447, %v441, %v458
        %v460 = vsel %vm446, %v457, %v459
        %v461 = vshll.u32 %v421, 8
        %v462 = vmul.u32.u64.compose %v461, %v460
        %v463 = vextract.low.u32 %v462
        %v464 = vextract.high.u32 %v462
        %v465 = vmul.u32.u64.compose %v461, %v456
        %v466 = vextract.low.u32 %v465
        %v467 = vextract.high.u32 %v465
        %v468 = vmul.u32 %v461, %v452
        %v469 = vadd.s32 %v464, %v466
        %vm470 = vc.u32 %v464, %v466
        %v471 = vadd.s32 %v467, 1
        %v472 = vsel %vm470, %v471, %v467
        %v473 = vadd.s32 %v468, %v472
        %v474 = vadd.s32 %v473, 536870912
        %v475 = vshrl.u32 %v474, 30
        %v476 = vshll.u32 %v475, 30
        %v477 = vsub.s32 %v473, %v476
        %vm478 = vcmp.lt.s32.totalorder %v477, 0
        %v479 = vsub.s32 0, %v477
        %v480 = vsel %vm478, %v479, %v477
        %v481 = vclz %v480
        %v482 = vsub.s32 %v481, 2
        %vm483 = vcmp.gt.s32.totalorder 0, %v482
        %v484 = vsel %vm483, 0, %v482
        %v485 = vsub.s32 32, %v484
        %v486 = vshll.u32 %v477, %v484
        %v487 = vshrl.u32 %v469, %v485
        %v488 = vor.u32 %v486, %v487
        %v489 = vsub.s32 4294967266, %v484
        %v490 = vadd.s32 %v489, 127
        %v491 = vshll.u32 %v490, 23
        %v492 = vor.u32 4788187, %v491
        %v493 = vand.u32 2147483647, %v492
        %v495 = vcvt.s32.f32 %v488
        %v496 = vmul.f32 %v495, %v493
        %v497 = vxor.u32 %v496, 2147483648
        %v498 = vsel %vm415, %v497, %v496
        %v499 = vsub.s32 4, %v475
        %v500 = vsel %vm415, %v499, %v475
        %v501 = vsel %vm414, %v295, %v498
        %v502 = vsel %vm414, 0, %v500
        %v503 = vcosq.f32.pop %v501
        %v504 = vsinq.f32.pop %v501
        %vm505 = vweird.f32 %v295
        %v506 = vand.u32 %v502, 3
        %vm507 = vcmp.lt.s32.totalorder %v506, 2
        %vm508 = vcmp.eq.s32.totalorder %v506, 0
        %v509 = vxor.u32 %v504, 2147483648
        %v510 = vsel %vm508, %v503, %v509
        %vm511 = vcmp.eq.s32.totalorder %v506, 2
        %v512 = vxor.u32 %v503, 2147483648
        %v513 = vsel %vm511, %v512, %v504
        %v514 = vsel %vm507, %v510, %v513
        %v515 = vsel %vm505, nan, %v514
        %v516 = vand.u32 2147483647, %v296
        %vm517 = vcmp.le.f32.partialorder %v516, 0.7853982
        %vm518 = vcmp.lt.s32.totalorder %v296, 0
        %v519 = vand.u32 %v296, 2139095040
        %v520 = vshrl.u32 %v519, 23
        %v521 = vsub.s32 %v520, 127
        %v522 = vand.u32 2147483647, %v296
        %v523 = vand.u32 %v522, 8388607
        %v524 = vor.u32 %v523, 8388608
        %v525 = vsub.s32 0, %v524
        %v526 = vadd.s32 %v521, 1
        %vm527 = vcmp.gt.s32.totalorder %v526, 0
        %v528 = vsel %vm527, %v526, 0
        %v529 = vshrl.u32 %v528, 5
        %v530 = vand.u32 %v528, 31
        %v531 = vsub.s32 32, %v530
        %v532 = vshrl.u32 683565275, %v531
        %v533 = vshll.u32 683565275, %v530
        %v534 = vshrl.u32 2475754826, %v531
        %v535 = vor.u32 %v533, %v534
        %v536 = vshll.u32 2475754826, %v530
        %v537 = vshrl.u32 2131351028, %v531
        %v538 = vor.u32 %v536, %v537
        %v539 = vshll.u32 2131351028, %v530
        %v540 = vshrl.u32 2102212464, %v531
        %v541 = vor.u32 %v539, %v540
        %v542 = vshll.u32 2102212464, %v530
        %v543 = vshrl.u32 920167782, %v531
        %v544 = vor.u32 %v542, %v543
        %v545 = vshll.u32 920167782, %v530
        %v546 = vshrl.u32 1326507024, %v531
        %v547 = vor.u32 %v545, %v546
        %vm548 = vcmp.lt.s32.totalorder %v529, 1
        %vm549 = vcmp.lt.s32.totalorder %v529, 2
        %vm550 = vcmp.lt.s32.totalorder %v529, 3
        %vm551 = vcmp.lt.s32.totalorder %v529, 4
        %v552 = vsel %vm548, %v532, %v535
        %v553 = vsel %vm551, %v541, 2102212464
        %v554 = vsel %vm550, %v538, %v553
        %v555 = vsel %vm549, %v552, %v554
        %v556 = vsel %vm548, %v535, %v538
        %v557 = vsel %vm551, %v544, 920167782
        %v558 = vsel %vm550, %v541, %v557
        %v559 = vsel %vm549, %v556, %v558
        %v560 = vsel %vm548, %v538, %v541
        %v561 = vsel %vm551, %v547, 1326507024
        %v562 = vsel %vm550, %v544, %v561
        %v563 = vsel %vm549, %v560, %v562
        %v564 = vshll.u32 %v524, 8
        %v565 = vmul.u32.u64.compose %v564, %v563
        %v566 = vextract.low.u32 %v565
        %v567 = vextract.high.u32 %v565
        %v568 = vmul.u32.u64.compose %v564, %v559
        %v569 = vextract.low.u32 %v568
        %v570 = vextract.high.u32 %v568
        %v571 = vmul.u32 %v564, %v555
        %v572 = vadd.s32 %v567, %v569
        %vm573 = vc.u32 %v567, %v569
        %v574 = vadd.s32 %v570, 1
        %v575 = vsel %vm573, %v574, %v570
        %v576 = vadd.s32 %v571, %v575
        %v577 = vadd.s32 %v576, 536870912
        %v578 = vshrl.u32 %v577, 30
        %v579 = vshll.u32 %v578, 30
        %v580 = vsub.s32 %v576, %v579
        %vm581 = vcmp.lt.s32.totalorder %v580, 0
        %v582 = vsub.s32 0, %v580
        %v583 = vsel %vm581, %v582, %v580
        %v584 = vclz %v583
        %v585 = vsub.s32 %v584, 2
        %vm586 = vcmp.gt.s32.totalorder 0, %v585
        %v587 = vsel %vm586, 0, %v585
        %v588 = vsub.s32 32, %v587
        %v589 = vshll.u32 %v580, %v587
        %v590 = vshrl.u32 %v572, %v588
        %v591 = vor.u32 %v589, %v590
        %v592 = vsub.s32 4294967266, %v587
        %v593 = vadd.s32 %v592, 127
        %v594 = vshll.u32 %v593, 23
        %v595 = vor.u32 4788187, %v594
        %v596 = vand.u32 2147483647, %v595
        %v598 = vcvt.s32.f32 %v591
        %v599 = vmul.f32 %v598, %v596
        %v600 = vxor.u32 %v599, 2147483648
        %v601 = vsel %vm518, %v600, %v599
        %v602 = vsub.s32 4, %v578
        %v603 = vsel %vm518, %v602, %v578
        %v604 = vsel %vm517, %v296, %v601
        %v605 = vsel %vm517, 0, %v603
        %v606 = vcosq.f32.pop %v604
        %v607 = vsinq.f32.pop %v604
        %vm608 = vweird.f32 %v296
        %v609 = vand.u32 %v605, 3
        %vm610 = vcmp.lt.s32.totalorder %v609, 2
        %vm611 = vcmp.eq.s32.totalorder %v609, 0
        %v612 = vxor.u32 %v607, 2147483648
        %v613 = vsel %vm611, %v606, %v612
        %vm614 = vcmp.eq.s32.totalorder %v609, 2
        %v615 = vxor.u32 %v606, 2147483648
        %v616 = vsel %vm614, %v615, %v607
        %v617 = vsel %vm610, %v613, %v616
        %v618 = vsel %vm608, nan, %v617
        %v619 = vand.u32 2147483647, %v297
        %vm620 = vcmp.le.f32.partialorder %v619, 0.7853982
        %vm621 = vcmp.lt.s32.totalorder %v297, 0
        %v622 = vand.u32 %v297, 2139095040
        %v623 = vshrl.u32 %v622, 23
        %v624 = vsub.s32 %v623, 127
        %v625 = vand.u32 2147483647, %v297
        %v626 = vand.u32 %v625, 8388607
        %v627 = vor.u32 %v626, 8388608
        %v628 = vsub.s32 0, %v627
        %v629 = vadd.s32 %v624, 1
        %vm630 = vcmp.gt.s32.totalorder %v629, 0
        %v631 = vsel %vm630, %v629, 0
        %v632 = vshrl.u32 %v631, 5
        %v633 = vand.u32 %v631, 31
        %v634 = vsub.s32 32, %v633
        %v635 = vshrl.u32 683565275, %v634
        %v636 = vshll.u32 683565275, %v633
        %v637 = vshrl.u32 2475754826, %v634
        %v638 = vor.u32 %v636, %v637
        %v639 = vshll.u32 2475754826, %v633
        %v640 = vshrl.u32 2131351028, %v634
        %v641 = vor.u32 %v639, %v640
        %v642 = vshll.u32 2131351028, %v633
        %v643 = vshrl.u32 2102212464, %v634
        %v644 = vor.u32 %v642, %v643
        %v645 = vshll.u32 2102212464, %v633
        %v646 = vshrl.u32 920167782, %v634
        %v647 = vor.u32 %v645, %v646
        %v648 = vshll.u32 920167782, %v633
        %v649 = vshrl.u32 1326507024, %v634
        %v650 = vor.u32 %v648, %v649
        %vm651 = vcmp.lt.s32.totalorder %v632, 1
        %vm652 = vcmp.lt.s32.totalorder %v632, 2
        %vm653 = vcmp.lt.s32.totalorder %v632, 3
        %vm654 = vcmp.lt.s32.totalorder %v632, 4
        %v655 = vsel %vm651, %v635, %v638
        %v656 = vsel %vm654, %v644, 2102212464
        %v657 = vsel %vm653, %v641, %v656
        %v658 = vsel %vm652, %v655, %v657
        %v659 = vsel %vm651, %v638, %v641
        %v660 = vsel %vm654, %v647, 920167782
        %v661 = vsel %vm653, %v644, %v660
        %v662 = vsel %vm652, %v659, %v661
        %v663 = vsel %vm651, %v641, %v644
        %v664 = vsel %vm654, %v650, 1326507024
        %v665 = vsel %vm653, %v647, %v664
        %v666 = vsel %vm652, %v663, %v665
        %v667 = vshll.u32 %v627, 8
        %v668 = vmul.u32.u64.compose %v667, %v666
        %v669 = vextract.low.u32 %v668
        %v670 = vextract.high.u32 %v668
        %v671 = vmul.u32.u64.compose %v667, %v662
        %v672 = vextract.low.u32 %v671
        %v673 = vextract.high.u32 %v671
        %v674 = vmul.u32 %v667, %v658
        %v675 = vadd.s32 %v670, %v672
        %vm676 = vc.u32 %v670, %v672
        %v677 = vadd.s32 %v673, 1
        %v678 = vsel %vm676, %v677, %v673
        %v679 = vadd.s32 %v674, %v678
        %v680 = vadd.s32 %v679, 536870912
        %v681 = vshrl.u32 %v680, 30
        %v682 = vshll.u32 %v681, 30
        %v683 = vsub.s32 %v679, %v682
        %vm684 = vcmp.lt.s32.totalorder %v683, 0
        %v685 = vsub.s32 0, %v683
        %v686 = vsel %vm684, %v685, %v683
        %v687 = vclz %v686
        %v688 = vsub.s32 %v687, 2
        %vm689 = vcmp.gt.s32.totalorder 0, %v688
        %v690 = vsel %vm689, 0, %v688
        %v691 = vsub.s32 32, %v690
        %v692 = vshll.u32 %v683, %v690
        %v693 = vshrl.u32 %v675, %v691
        %v694 = vor.u32 %v692, %v693
        %v695 = vsub.s32 4294967266, %v690
        %v696 = vadd.s32 %v695, 127
        %v697 = vshll.u32 %v696, 23
        %v698 = vor.u32 4788187, %v697
        %v699 = vand.u32 2147483647, %v698
        %v701 = vcvt.s32.f32 %v694
        %v702 = vmul.f32 %v701, %v699
        %v703 = vxor.u32 %v702, 2147483648
        %v704 = vsel %vm621, %v703, %v702
        %v705 = vsub.s32 4, %v681
        %v706 = vsel %vm621, %v705, %v681
        %v707 = vsel %vm620, %v297, %v704
        %v708 = vsel %vm620, 0, %v706
        %v709 = vcosq.f32.pop %v707
        %v710 = vsinq.f32.pop %v707
        %vm711 = vweird.f32 %v297
        %v712 = vand.u32 %v708, 3
        %vm713 = vcmp.lt.s32.totalorder %v712, 2
        %vm714 = vcmp.eq.s32.totalorder %v712, 0
        %v715 = vxor.u32 %v710, 2147483648
        %v716 = vsel %vm714, %v709, %v715
        %vm717 = vcmp.eq.s32.totalorder %v712, 2
        %v718 = vxor.u32 %v709, 2147483648
        %v719 = vsel %vm717, %v718, %v710
        %v720 = vsel %vm713, %v716, %v719
        %v721 = vsel %vm711, nan, %v720
        %v722 = vand.u32 2147483647, %v298
        %vm723 = vcmp.le.f32.partialorder %v722, 0.7853982
        %vm724 = vcmp.lt.s32.totalorder %v298, 0
        %v725 = vand.u32 %v298, 2139095040
        %v726 = vshrl.u32 %v725, 23
        %v727 = vsub.s32 %v726, 127
        %v728 = vand.u32 2147483647, %v298
        %v729 = vand.u32 %v728, 8388607
        %v730 = vor.u32 %v729, 8388608
        %v731 = vsub.s32 0, %v730
        %v732 = vadd.s32 %v727, 1
        %vm733 = vcmp.gt.s32.totalorder %v732, 0
        %v734 = vsel %vm733, %v732, 0
        %v735 = vshrl.u32 %v734, 5
        %v736 = vand.u32 %v734, 31
        %v737 = vsub.s32 32, %v736
        %v738 = vshrl.u32 683565275, %v737
        %v739 = vshll.u32 683565275, %v736
        %v740 = vshrl.u32 2475754826, %v737
        %v741 = vor.u32 %v739, %v740
        %v742 = vshll.u32 2475754826, %v736
        %v743 = vshrl.u32 2131351028, %v737
        %v744 = vor.u32 %v742, %v743
        %v745 = vshll.u32 2131351028, %v736
        %v746 = vshrl.u32 2102212464, %v737
        %v747 = vor.u32 %v745, %v746
        %v748 = vshll.u32 2102212464, %v736
        %v749 = vshrl.u32 920167782, %v737
        %v750 = vor.u32 %v748, %v749
        %v751 = vshll.u32 920167782, %v736
        %v752 = vshrl.u32 1326507024, %v737
        %v753 = vor.u32 %v751, %v752
        %vm754 = vcmp.lt.s32.totalorder %v735, 1
        %vm755 = vcmp.lt.s32.totalorder %v735, 2
        %vm756 = vcmp.lt.s32.totalorder %v735, 3
        %vm757 = vcmp.lt.s32.totalorder %v735, 4
        %v758 = vsel %vm754, %v738, %v741
        %v759 = vsel %vm757, %v747, 2102212464
        %v760 = vsel %vm756, %v744, %v759
        %v761 = vsel %vm755, %v758, %v760
        %v762 = vsel %vm754, %v741, %v744
        %v763 = vsel %vm757, %v750, 920167782
        %v764 = vsel %vm756, %v747, %v763
        %v765 = vsel %vm755, %v762, %v764
        %v766 = vsel %vm754, %v744, %v747
        %v767 = vsel %vm757, %v753, 1326507024
        %v768 = vsel %vm756, %v750, %v767
        %v769 = vsel %vm755, %v766, %v768
        %v770 = vshll.u32 %v730, 8
        %v771 = vmul.u32.u64.compose %v770, %v769
        %v772 = vextract.low.u32 %v771
        %v773 = vextract.high.u32 %v771
        %v774 = vmul.u32.u64.compose %v770, %v765
        %v775 = vextract.low.u32 %v774
        %v776 = vextract.high.u32 %v774
        %v777 = vmul.u32 %v770, %v761
        %v778 = vadd.s32 %v773, %v775
        %vm779 = vc.u32 %v773, %v775
        %v780 = vadd.s32 %v776, 1
        %v781 = vsel %vm779, %v780, %v776
        %v782 = vadd.s32 %v777, %v781
        %v783 = vadd.s32 %v782, 536870912
        %v784 = vshrl.u32 %v783, 30
        %v785 = vshll.u32 %v784, 30
        %v786 = vsub.s32 %v782, %v785
        %vm787 = vcmp.lt.s32.totalorder %v786, 0
        %v788 = vsub.s32 0, %v786
        %v789 = vsel %vm787, %v788, %v786
        %v790 = vclz %v789
        %v791 = vsub.s32 %v790, 2
        %vm792 = vcmp.gt.s32.totalorder 0, %v791
        %v793 = vsel %vm792, 0, %v791
        %v794 = vsub.s32 32, %v793
        %v795 = vshll.u32 %v786, %v793
        %v796 = vshrl.u32 %v778, %v794
        %v797 = vor.u32 %v795, %v796
        %v798 = vsub.s32 4294967266, %v793
        %v799 = vadd.s32 %v798, 127
        %v800 = vshll.u32 %v799, 23
        %v801 = vor.u32 4788187, %v800
        %v802 = vand.u32 2147483647, %v801
        %v804 = vcvt.s32.f32 %v797
        %v805 = vmul.f32 %v804, %v802
        %v806 = vxor.u32 %v805, 2147483648
        %v807 = vsel %vm724, %v806, %v805
        %v808 = vsub.s32 4, %v784
        %v809 = vsel %vm724, %v808, %v784
        %v810 = vsel %vm723, %v298, %v807
        %v811 = vsel %vm723, 0, %v809
        %v812 = vcosq.f32.pop %v810
        %v813 = vsinq.f32.pop %v810
        %vm814 = vweird.f32 %v298
        %v815 = vand.u32 %v811, 3
        %vm816 = vcmp.lt.s32.totalorder %v815, 2
        %vm817 = vcmp.eq.s32.totalorder %v815, 0
        %v818 = vxor.u32 %v813, 2147483648
        %v819 = vsel %vm817, %v812, %v818
        %vm820 = vcmp.eq.s32.totalorder %v815, 2
        %v821 = vxor.u32 %v812, 2147483648
        %v822 = vsel %vm820, %v821, %v813
        %v823 = vsel %vm816, %v819, %v822
        %v824 = vsel %vm814, nan, %v823
        %v825 = vand.u32 2147483647, %v299
        %vm826 = vcmp.le.f32.partialorder %v825, 0.7853982
        %vm827 = vcmp.lt.s32.totalorder %v299, 0
        %v828 = vand.u32 %v299, 2139095040
        %v829 = vshrl.u32 %v828, 23
        %v830 = vsub.s32 %v829, 127
        %v831 = vand.u32 2147483647, %v299
        %v832 = vand.u32 %v831, 8388607
        %v833 = vor.u32 %v832, 8388608
        %v834 = vsub.s32 0, %v833
        %v835 = vadd.s32 %v830, 1
        %vm836 = vcmp.gt.s32.totalorder %v835, 0
        %v837 = vsel %vm836, %v835, 0
        %v838 = vshrl.u32 %v837, 5
        %v839 = vand.u32 %v837, 31
        %v840 = vsub.s32 32, %v839
        %v841 = vshrl.u32 683565275, %v840
        %v842 = vshll.u32 683565275, %v839
        %v843 = vshrl.u32 2475754826, %v840
        %v844 = vor.u32 %v842, %v843
        %v845 = vshll.u32 2475754826, %v839
        %v846 = vshrl.u32 2131351028, %v840
        %v847 = vor.u32 %v845, %v846
        %v848 = vshll.u32 2131351028, %v839
        %v849 = vshrl.u32 2102212464, %v840
        %v850 = vor.u32 %v848, %v849
        %v851 = vshll.u32 2102212464, %v839
        %v852 = vshrl.u32 920167782, %v840
        %v853 = vor.u32 %v851, %v852
        %v854 = vshll.u32 920167782, %v839
        %v855 = vshrl.u32 1326507024, %v840
        %v856 = vor.u32 %v854, %v855
        %vm857 = vcmp.lt.s32.totalorder %v838, 1
        %vm858 = vcmp.lt.s32.totalorder %v838, 2
        %vm859 = vcmp.lt.s32.totalorder %v838, 3
        %vm860 = vcmp.lt.s32.totalorder %v838, 4
        %v861 = vsel %vm857, %v841, %v844
        %v862 = vsel %vm860, %v850, 2102212464
        %v863 = vsel %vm859, %v847, %v862
        %v864 = vsel %vm858, %v861, %v863
        %v865 = vsel %vm857, %v844, %v847
        %v866 = vsel %vm860, %v853, 920167782
        %v867 = vsel %vm859, %v850, %v866
        %v868 = vsel %vm858, %v865, %v867
        %v869 = vsel %vm857, %v847, %v850
        %v870 = vsel %vm860, %v856, 1326507024
        %v871 = vsel %vm859, %v853, %v870
        %v872 = vsel %vm858, %v869, %v871
        %v873 = vshll.u32 %v833, 8
        %v874 = vmul.u32.u64.compose %v873, %v872
        %v875 = vextract.low.u32 %v874
        %v876 = vextract.high.u32 %v874
        %v877 = vmul.u32.u64.compose %v873, %v868
        %v878 = vextract.low.u32 %v877
        %v879 = vextract.high.u32 %v877
        %v880 = vmul.u32 %v873, %v864
        %v881 = vadd.s32 %v876, %v878
        %vm882 = vc.u32 %v876, %v878
        %v883 = vadd.s32 %v879, 1
        %v884 = vsel %vm882, %v883, %v879
        %v885 = vadd.s32 %v880, %v884
        %v886 = vadd.s32 %v885, 536870912
        %v887 = vshrl.u32 %v886, 30
        %v888 = vshll.u32 %v887, 30
        %v889 = vsub.s32 %v885, %v888
        %vm890 = vcmp.lt.s32.totalorder %v889, 0
        %v891 = vsub.s32 0, %v889
        %v892 = vsel %vm890, %v891, %v889
        %v893 = vclz %v892
        %v894 = vsub.s32 %v893, 2
        %vm895 = vcmp.gt.s32.totalorder 0, %v894
        %v896 = vsel %vm895, 0, %v894
        %v897 = vsub.s32 32, %v896
        %v898 = vshll.u32 %v889, %v896
        %v899 = vshrl.u32 %v881, %v897
        %v900 = vor.u32 %v898, %v899
        %v901 = vsub.s32 4294967266, %v896
        %v902 = vadd.s32 %v901, 127
        %v903 = vshll.u32 %v902, 23
        %v904 = vor.u32 4788187, %v903
        %v905 = vand.u32 2147483647, %v904
        %v907 = vcvt.s32.f32 %v900
        %v908 = vmul.f32 %v907, %v905
        %v909 = vxor.u32 %v908, 2147483648
        %v910 = vsel %vm827, %v909, %v908
        %v911 = vsub.s32 4, %v887
        %v912 = vsel %vm827, %v911, %v887
        %v913 = vsel %vm826, %v299, %v910
        %v914 = vsel %vm826, 0, %v912
        %v915 = vcosq.f32.pop %v913
        %v916 = vsinq.f32.pop %v913
        %vm917 = vweird.f32 %v299
        %v918 = vand.u32 %v914, 3
        %vm919 = vcmp.lt.s32.totalorder %v918, 2
        %vm920 = vcmp.eq.s32.totalorder %v918, 0
        %v921 = vxor.u32 %v916, 2147483648
        %v922 = vsel %vm920, %v915, %v921
        %vm923 = vcmp.eq.s32.totalorder %v918, 2
        %v924 = vxor.u32 %v915, 2147483648
        %v925 = vsel %vm923, %v924, %v916
        %v926 = vsel %vm919, %v922, %v925
        %v927 = vsel %vm917, nan, %v926
        %v928 = vand.u32 2147483647, %v300
        %vm929 = vcmp.le.f32.partialorder %v928, 0.7853982
        %vm930 = vcmp.lt.s32.totalorder %v300, 0
        %v931 = vand.u32 %v300, 2139095040
        %v932 = vshrl.u32 %v931, 23
        %v933 = vsub.s32 %v932, 127
        %v934 = vand.u32 2147483647, %v300
        %v935 = vand.u32 %v934, 8388607
        %v936 = vor.u32 %v935, 8388608
        %v937 = vsub.s32 0, %v936
        %v938 = vadd.s32 %v933, 1
        %vm939 = vcmp.gt.s32.totalorder %v938, 0
        %v940 = vsel %vm939, %v938, 0
        %v941 = vshrl.u32 %v940, 5
        %v942 = vand.u32 %v940, 31
        %v943 = vsub.s32 32, %v942
        %v944 = vshrl.u32 683565275, %v943
        %v945 = vshll.u32 683565275, %v942
        %v946 = vshrl.u32 2475754826, %v943
        %v947 = vor.u32 %v945, %v946
        %v948 = vshll.u32 2475754826, %v942
        %v949 = vshrl.u32 2131351028, %v943
        %v950 = vor.u32 %v948, %v949
        %v951 = vshll.u32 2131351028, %v942
        %v952 = vshrl.u32 2102212464, %v943
        %v953 = vor.u32 %v951, %v952
        %v954 = vshll.u32 2102212464, %v942
        %v955 = vshrl.u32 920167782, %v943
        %v956 = vor.u32 %v954, %v955
        %v957 = vshll.u32 920167782, %v942
        %v958 = vshrl.u32 1326507024, %v943
        %v959 = vor.u32 %v957, %v958
        %vm960 = vcmp.lt.s32.totalorder %v941, 1
        %vm961 = vcmp.lt.s32.totalorder %v941, 2
        %vm962 = vcmp.lt.s32.totalorder %v941, 3
        %vm963 = vcmp.lt.s32.totalorder %v941, 4
        %v964 = vsel %vm960, %v944, %v947
        %v965 = vsel %vm963, %v953, 2102212464
        %v966 = vsel %vm962, %v950, %v965
        %v967 = vsel %vm961, %v964, %v966
        %v968 = vsel %vm960, %v947, %v950
        %v969 = vsel %vm963, %v956, 920167782
        %v970 = vsel %vm962, %v953, %v969
        %v971 = vsel %vm961, %v968, %v970
        %v972 = vsel %vm960, %v950, %v953
        %v973 = vsel %vm963, %v959, 1326507024
        %v974 = vsel %vm962, %v956, %v973
        %v975 = vsel %vm961, %v972, %v974
        %v976 = vshll.u32 %v936, 8
        %v977 = vmul.u32.u64.compose %v976, %v975
        %v978 = vextract.low.u32 %v977
        %v979 = vextract.high.u32 %v977
        %v980 = vmul.u32.u64.compose %v976, %v971
        %v981 = vextract.low.u32 %v980
        %v982 = vextract.high.u32 %v980
        %v983 = vmul.u32 %v976, %v967
        %v984 = vadd.s32 %v979, %v981
        %vm985 = vc.u32 %v979, %v981
        %v986 = vadd.s32 %v982, 1
        %v987 = vsel %vm985, %v986, %v982
        %v988 = vadd.s32 %v983, %v987
        %v989 = vadd.s32 %v988, 536870912
        %v990 = vshrl.u32 %v989, 30
        %v991 = vshll.u32 %v990, 30
        %v992 = vsub.s32 %v988, %v991
        %vm993 = vcmp.lt.s32.totalorder %v992, 0
        %v994 = vsub.s32 0, %v992
        %v995 = vsel %vm993, %v994, %v992
        %v996 = vclz %v995
        %v997 = vsub.s32 %v996, 2
        %vm998 = vcmp.gt.s32.totalorder 0, %v997
        %v999 = vsel %vm998, 0, %v997
        %v1000 = vsub.s32 32, %v999
        %v1001 = vshll.u32 %v992, %v999
        %v1002 = vshrl.u32 %v984, %v1000
        %v1003 = vor.u32 %v1001, %v1002
        %v1004 = vsub.s32 4294967266, %v999
        %v1005 = vadd.s32 %v1004, 127
        %v1006 = vshll.u32 %v1005, 23
        %v1007 = vor.u32 4788187, %v1006
        %v1008 = vand.u32 2147483647, %v1007
        %v1010 = vcvt.s32.f32 %v1003
        %v1011 = vmul.f32 %v1010, %v1008
        %v1012 = vxor.u32 %v1011, 2147483648
        %v1013 = vsel %vm930, %v1012, %v1011
        %v1014 = vsub.s32 4, %v990
        %v1015 = vsel %vm930, %v1014, %v990
        %v1016 = vsel %vm929, %v300, %v1013
        %v1017 = vsel %vm929, 0, %v1015
        %v1018 = vcosq.f32.pop %v1016
        %v1019 = vsinq.f32.pop %v1016
        %vm1020 = vweird.f32 %v300
        %v1021 = vand.u32 %v1017, 3
        %vm1022 = vcmp.lt.s32.totalorder %v1021, 2
        %vm1023 = vcmp.eq.s32.totalorder %v1021, 0
        %v1024 = vxor.u32 %v1019, 2147483648
        %v1025 = vsel %vm1023, %v1018, %v1024
        %vm1026 = vcmp.eq.s32.totalorder %v1021, 2
        %v1027 = vxor.u32 %v1018, 2147483648
        %v1028 = vsel %vm1026, %v1027, %v1019
        %v1029 = vsel %vm1022, %v1025, %v1028
        %v1030 = vsel %vm1020, nan, %v1029
        %v1031 = vand.u32 2147483647, %v301
        %vm1032 = vcmp.le.f32.partialorder %v1031, 0.7853982
        %vm1033 = vcmp.lt.s32.totalorder %v301, 0
        %v1034 = vand.u32 %v301, 2139095040
        %v1035 = vshrl.u32 %v1034, 23
        %v1036 = vsub.s32 %v1035, 127
        %v1037 = vand.u32 2147483647, %v301
        %v1038 = vand.u32 %v1037, 8388607
        %v1039 = vor.u32 %v1038, 8388608
        %v1040 = vsub.s32 0, %v1039
        %v1041 = vadd.s32 %v1036, 1
        %vm1042 = vcmp.gt.s32.totalorder %v1041, 0
        %v1043 = vsel %vm1042, %v1041, 0
        %v1044 = vshrl.u32 %v1043, 5
        %v1045 = vand.u32 %v1043, 31
        %v1046 = vsub.s32 32, %v1045
        %v1047 = vshrl.u32 683565275, %v1046
        %v1048 = vshll.u32 683565275, %v1045
        %v1049 = vshrl.u32 2475754826, %v1046
        %v1050 = vor.u32 %v1048, %v1049
        %v1051 = vshll.u32 2475754826, %v1045
        %v1052 = vshrl.u32 2131351028, %v1046
        %v1053 = vor.u32 %v1051, %v1052
        %v1054 = vshll.u32 2131351028, %v1045
        %v1055 = vshrl.u32 2102212464, %v1046
        %v1056 = vor.u32 %v1054, %v1055
        %v1057 = vshll.u32 2102212464, %v1045
        %v1058 = vshrl.u32 920167782, %v1046
        %v1059 = vor.u32 %v1057, %v1058
        %v1060 = vshll.u32 920167782, %v1045
        %v1061 = vshrl.u32 1326507024, %v1046
        %v1062 = vor.u32 %v1060, %v1061
        %vm1063 = vcmp.lt.s32.totalorder %v1044, 1
        %vm1064 = vcmp.lt.s32.totalorder %v1044, 2
        %vm1065 = vcmp.lt.s32.totalorder %v1044, 3
        %vm1066 = vcmp.lt.s32.totalorder %v1044, 4
        %v1067 = vsel %vm1063, %v1047, %v1050
        %v1068 = vsel %vm1066, %v1056, 2102212464
        %v1069 = vsel %vm1065, %v1053, %v1068
        %v1070 = vsel %vm1064, %v1067, %v1069
        %v1071 = vsel %vm1063, %v1050, %v1053
        %v1072 = vsel %vm1066, %v1059, 920167782
        %v1073 = vsel %vm1065, %v1056, %v1072
        %v1074 = vsel %vm1064, %v1071, %v1073
        %v1075 = vsel %vm1063, %v1053, %v1056
        %v1076 = vsel %vm1066, %v1062, 1326507024
        %v1077 = vsel %vm1065, %v1059, %v1076
        %v1078 = vsel %vm1064, %v1075, %v1077
        %v1079 = vshll.u32 %v1039, 8
        %v1080 = vmul.u32.u64.compose %v1079, %v1078
        %v1081 = vextract.low.u32 %v1080
        %v1082 = vextract.high.u32 %v1080
        %v1083 = vmul.u32.u64.compose %v1079, %v1074
        %v1084 = vextract.low.u32 %v1083
        %v1085 = vextract.high.u32 %v1083
        %v1086 = vmul.u32 %v1079, %v1070
        %v1087 = vadd.s32 %v1082, %v1084
        %vm1088 = vc.u32 %v1082, %v1084
        %v1089 = vadd.s32 %v1085, 1
        %v1090 = vsel %vm1088, %v1089, %v1085
        %v1091 = vadd.s32 %v1086, %v1090
        %v1092 = vadd.s32 %v1091, 536870912
        %v1093 = vshrl.u32 %v1092, 30
        %v1094 = vshll.u32 %v1093, 30
        %v1095 = vsub.s32 %v1091, %v1094
        %vm1096 = vcmp.lt.s32.totalorder %v1095, 0
        %v1097 = vsub.s32 0, %v1095
        %v1098 = vsel %vm1096, %v1097, %v1095
        %v1099 = vclz %v1098
        %v1100 = vsub.s32 %v1099, 2
        %vm1101 = vcmp.gt.s32.totalorder 0, %v1100
        %v1102 = vsel %vm1101, 0, %v1100
        %v1103 = vsub.s32 32, %v1102
        %v1104 = vshll.u32 %v1095, %v1102
        %v1105 = vshrl.u32 %v1087, %v1103
        %v1106 = vor.u32 %v1104, %v1105
        %v1107 = vsub.s32 4294967266, %v1102
        %v1108 = vadd.s32 %v1107, 127
        %v1109 = vshll.u32 %v1108, 23
        %v1110 = vor.u32 4788187, %v1109
        %v1111 = vand.u32 2147483647, %v1110
        %v1113 = vcvt.s32.f32 %v1106
        %v1114 = vmul.f32 %v1113, %v1111
        %v1115 = vxor.u32 %v1114, 2147483648
        %v1116 = vsel %vm1033, %v1115, %v1114
        %v1117 = vsub.s32 4, %v1093
        %v1118 = vsel %vm1033, %v1117, %v1093
        %v1119 = vsel %vm1032, %v301, %v1116
        %v1120 = vsel %vm1032, 0, %v1118
        %v1121 = vcosq.f32.pop %v1119
        %v1122 = vsinq.f32.pop %v1119
        %vm1123 = vweird.f32 %v301
        %v1124 = vand.u32 %v1120, 3
        %vm1125 = vcmp.lt.s32.totalorder %v1124, 2
        %vm1126 = vcmp.eq.s32.totalorder %v1124, 0
        %v1127 = vxor.u32 %v1122, 2147483648
        %v1128 = vsel %vm1126, %v1121, %v1127
        %vm1129 = vcmp.eq.s32.totalorder %v1124, 2
        %v1130 = vxor.u32 %v1121, 2147483648
        %v1131 = vsel %vm1129, %v1130, %v1122
        %v1132 = vsel %vm1125, %v1128, %v1131
        %v1133 = vsel %vm1123, nan, %v1132
        %v1134 = vand.u32 2147483647, %v302
        %vm1135 = vcmp.le.f32.partialorder %v1134, 0.7853982
        %vm1136 = vcmp.lt.s32.totalorder %v302, 0
        %v1137 = vand.u32 %v302, 2139095040
        %v1138 = vshrl.u32 %v1137, 23
        %v1139 = vsub.s32 %v1138, 127
        %v1140 = vand.u32 2147483647, %v302
        %v1141 = vand.u32 %v1140, 8388607
        %v1142 = vor.u32 %v1141, 8388608
        %v1143 = vsub.s32 0, %v1142
        %v1144 = vadd.s32 %v1139, 1
        %vm1145 = vcmp.gt.s32.totalorder %v1144, 0
        %v1146 = vsel %vm1145, %v1144, 0
        %v1147 = vshrl.u32 %v1146, 5
        %v1148 = vand.u32 %v1146, 31
        %v1149 = vsub.s32 32, %v1148
        %v1150 = vshrl.u32 683565275, %v1149
        %v1151 = vshll.u32 683565275, %v1148
        %v1152 = vshrl.u32 2475754826, %v1149
        %v1153 = vor.u32 %v1151, %v1152
        %v1154 = vshll.u32 2475754826, %v1148
        %v1155 = vshrl.u32 2131351028, %v1149
        %v1156 = vor.u32 %v1154, %v1155
        %v1157 = vshll.u32 2131351028, %v1148
        %v1158 = vshrl.u32 2102212464, %v1149
        %v1159 = vor.u32 %v1157, %v1158
        %v1160 = vshll.u32 2102212464, %v1148
        %v1161 = vshrl.u32 920167782, %v1149
        %v1162 = vor.u32 %v1160, %v1161
        %v1163 = vshll.u32 920167782, %v1148
        %v1164 = vshrl.u32 1326507024, %v1149
        %v1165 = vor.u32 %v1163, %v1164
        %vm1166 = vcmp.lt.s32.totalorder %v1147, 1
        %vm1167 = vcmp.lt.s32.totalorder %v1147, 2
        %vm1168 = vcmp.lt.s32.totalorder %v1147, 3
        %vm1169 = vcmp.lt.s32.totalorder %v1147, 4
        %v1170 = vsel %vm1166, %v1150, %v1153
        %v1171 = vsel %vm1169, %v1159, 2102212464
        %v1172 = vsel %vm1168, %v1156, %v1171
        %v1173 = vsel %vm1167, %v1170, %v1172
        %v1174 = vsel %vm1166, %v1153, %v1156
        %v1175 = vsel %vm1169, %v1162, 920167782
        %v1176 = vsel %vm1168, %v1159, %v1175
        %v1177 = vsel %vm1167, %v1174, %v1176
        %v1178 = vsel %vm1166, %v1156, %v1159
        %v1179 = vsel %vm1169, %v1165, 1326507024
        %v1180 = vsel %vm1168, %v1162, %v1179
        %v1181 = vsel %vm1167, %v1178, %v1180
        %v1182 = vshll.u32 %v1142, 8
        %v1183 = vmul.u32.u64.compose %v1182, %v1181
        %v1184 = vextract.low.u32 %v1183
        %v1185 = vextract.high.u32 %v1183
        %v1186 = vmul.u32.u64.compose %v1182, %v1177
        %v1187 = vextract.low.u32 %v1186
        %v1188 = vextract.high.u32 %v1186
        %v1189 = vmul.u32 %v1182, %v1173
        %v1190 = vadd.s32 %v1185, %v1187
        %vm1191 = vc.u32 %v1185, %v1187
        %v1192 = vadd.s32 %v1188, 1
        %v1193 = vsel %vm1191, %v1192, %v1188
        %v1194 = vadd.s32 %v1189, %v1193
        %v1195 = vadd.s32 %v1194, 536870912
        %v1196 = vshrl.u32 %v1195, 30
        %v1197 = vshll.u32 %v1196, 30
        %v1198 = vsub.s32 %v1194, %v1197
        %vm1199 = vcmp.lt.s32.totalorder %v1198, 0
        %v1200 = vsub.s32 0, %v1198
        %v1201 = vsel %vm1199, %v1200, %v1198
        %v1202 = vclz %v1201
        %v1203 = vsub.s32 %v1202, 2
        %vm1204 = vcmp.gt.s32.totalorder 0, %v1203
        %v1205 = vsel %vm1204, 0, %v1203
        %v1206 = vsub.s32 32, %v1205
        %v1207 = vshll.u32 %v1198, %v1205
        %v1208 = vshrl.u32 %v1190, %v1206
        %v1209 = vor.u32 %v1207, %v1208
        %v1210 = vsub.s32 4294967266, %v1205
        %v1211 = vadd.s32 %v1210, 127
        %v1212 = vshll.u32 %v1211, 23
        %v1213 = vor.u32 4788187, %v1212
        %v1214 = vand.u32 2147483647, %v1213
        %v1216 = vcvt.s32.f32 %v1209
        %v1217 = vmul.f32 %v1216, %v1214
        %v1218 = vxor.u32 %v1217, 2147483648
        %v1219 = vsel %vm1136, %v1218, %v1217
        %v1220 = vsub.s32 4, %v1196
        %v1221 = vsel %vm1136, %v1220, %v1196
        %v1222 = vsel %vm1135, %v302, %v1219
        %v1223 = vsel %vm1135, 0, %v1221
        %v1224 = vcosq.f32.pop %v1222
        %v1225 = vsinq.f32.pop %v1222
        %vm1226 = vweird.f32 %v302
        %v1227 = vand.u32 %v1223, 3
        %vm1228 = vcmp.lt.s32.totalorder %v1227, 2
        %vm1229 = vcmp.eq.s32.totalorder %v1227, 0
        %v1230 = vxor.u32 %v1225, 2147483648
        %v1231 = vsel %vm1229, %v1224, %v1230
        %vm1232 = vcmp.eq.s32.totalorder %v1227, 2
        %v1233 = vxor.u32 %v1224, 2147483648
        %v1234 = vsel %vm1232, %v1233, %v1225
        %v1235 = vsel %vm1228, %v1231, %v1234
        %v1236 = vsel %vm1226, nan, %v1235
        %v1237 = vand.u32 2147483647, %v303
        %vm1238 = vcmp.le.f32.partialorder %v1237, 0.7853982
        %vm1239 = vcmp.lt.s32.totalorder %v303, 0
        %v1240 = vand.u32 %v303, 2139095040
        %v1241 = vshrl.u32 %v1240, 23
        %v1242 = vsub.s32 %v1241, 127
        %v1243 = vand.u32 2147483647, %v303
        %v1244 = vand.u32 %v1243, 8388607
        %v1245 = vor.u32 %v1244, 8388608
        %v1246 = vsub.s32 0, %v1245
        %v1247 = vadd.s32 %v1242, 1
        %vm1248 = vcmp.gt.s32.totalorder %v1247, 0
        %v1249 = vsel %vm1248, %v1247, 0
        %v1250 = vshrl.u32 %v1249, 5
        %v1251 = vand.u32 %v1249, 31
        %v1252 = vsub.s32 32, %v1251
        %v1253 = vshrl.u32 683565275, %v1252
        %v1254 = vshll.u32 683565275, %v1251
        %v1255 = vshrl.u32 2475754826, %v1252
        %v1256 = vor.u32 %v1254, %v1255
        %v1257 = vshll.u32 2475754826, %v1251
        %v1258 = vshrl.u32 2131351028, %v1252
        %v1259 = vor.u32 %v1257, %v1258
        %v1260 = vshll.u32 2131351028, %v1251
        %v1261 = vshrl.u32 2102212464, %v1252
        %v1262 = vor.u32 %v1260, %v1261
        %v1263 = vshll.u32 2102212464, %v1251
        %v1264 = vshrl.u32 920167782, %v1252
        %v1265 = vor.u32 %v1263, %v1264
        %v1266 = vshll.u32 920167782, %v1251
        %v1267 = vshrl.u32 1326507024, %v1252
        %v1268 = vor.u32 %v1266, %v1267
        %vm1269 = vcmp.lt.s32.totalorder %v1250, 1
        %vm1270 = vcmp.lt.s32.totalorder %v1250, 2
        %vm1271 = vcmp.lt.s32.totalorder %v1250, 3
        %vm1272 = vcmp.lt.s32.totalorder %v1250, 4
        %v1273 = vsel %vm1269, %v1253, %v1256
        %v1274 = vsel %vm1272, %v1262, 2102212464
        %v1275 = vsel %vm1271, %v1259, %v1274
        %v1276 = vsel %vm1270, %v1273, %v1275
        %v1277 = vsel %vm1269, %v1256, %v1259
        %v1278 = vsel %vm1272, %v1265, 920167782
        %v1279 = vsel %vm1271, %v1262, %v1278
        %v1280 = vsel %vm1270, %v1277, %v1279
        %v1281 = vsel %vm1269, %v1259, %v1262
        %v1282 = vsel %vm1272, %v1268, 1326507024
        %v1283 = vsel %vm1271, %v1265, %v1282
        %v1284 = vsel %vm1270, %v1281, %v1283
        %v1285 = vshll.u32 %v1245, 8
        %v1286 = vmul.u32.u64.compose %v1285, %v1284
        %v1287 = vextract.low.u32 %v1286
        %v1288 = vextract.high.u32 %v1286
        %v1289 = vmul.u32.u64.compose %v1285, %v1280
        %v1290 = vextract.low.u32 %v1289
        %v1291 = vextract.high.u32 %v1289
        %v1292 = vmul.u32 %v1285, %v1276
        %v1293 = vadd.s32 %v1288, %v1290
        %vm1294 = vc.u32 %v1288, %v1290
        %v1295 = vadd.s32 %v1291, 1
        %v1296 = vsel %vm1294, %v1295, %v1291
        %v1297 = vadd.s32 %v1292, %v1296
        %v1298 = vadd.s32 %v1297, 536870912
        %v1299 = vshrl.u32 %v1298, 30
        %v1300 = vshll.u32 %v1299, 30
        %v1301 = vsub.s32 %v1297, %v1300
        %vm1302 = vcmp.lt.s32.totalorder %v1301, 0
        %v1303 = vsub.s32 0, %v1301
        %v1304 = vsel %vm1302, %v1303, %v1301
        %v1305 = vclz %v1304
        %v1306 = vsub.s32 %v1305, 2
        %vm1307 = vcmp.gt.s32.totalorder 0, %v1306
        %v1308 = vsel %vm1307, 0, %v1306
        %v1309 = vsub.s32 32, %v1308
        %v1310 = vshll.u32 %v1301, %v1308
        %v1311 = vshrl.u32 %v1293, %v1309
        %v1312 = vor.u32 %v1310, %v1311
        %v1313 = vsub.s32 4294967266, %v1308
        %v1314 = vadd.s32 %v1313, 127
        %v1315 = vshll.u32 %v1314, 23
        %v1316 = vor.u32 4788187, %v1315
        %v1317 = vand.u32 2147483647, %v1316
        %v1319 = vcvt.s32.f32 %v1312
        %v1320 = vmul.f32 %v1319, %v1317
        %v1321 = vxor.u32 %v1320, 2147483648
        %v1322 = vsel %vm1239, %v1321, %v1320
        %v1323 = vsub.s32 4, %v1299
        %v1324 = vsel %vm1239, %v1323, %v1299
        %v1325 = vsel %vm1238, %v303, %v1322
        %v1326 = vsel %vm1238, 0, %v1324
        %v1327 = vcosq.f32.pop %v1325
        %v1328 = vsinq.f32.pop %v1325
        %vm1329 = vweird.f32 %v303
        %v1330 = vand.u32 %v1326, 3
        %vm1331 = vcmp.lt.s32.totalorder %v1330, 2
        %vm1332 = vcmp.eq.s32.totalorder %v1330, 0
        %v1333 = vxor.u32 %v1328, 2147483648
        %v1334 = vsel %vm1332, %v1327, %v1333
        %vm1335 = vcmp.eq.s32.totalorder %v1330, 2
        %v1336 = vxor.u32 %v1327, 2147483648
        %v1337 = vsel %vm1335, %v1336, %v1328
        %v1338 = vsel %vm1331, %v1334, %v1337
        %v1339 = vsel %vm1329, nan, %v1338
        %v1340 = vand.u32 2147483647, %v304
        %vm1341 = vcmp.le.f32.partialorder %v1340, 0.7853982
        %vm1342 = vcmp.lt.s32.totalorder %v304, 0
        %v1343 = vand.u32 %v304, 2139095040
        %v1344 = vshrl.u32 %v1343, 23
        %v1345 = vsub.s32 %v1344, 127
        %v1346 = vand.u32 2147483647, %v304
        %v1347 = vand.u32 %v1346, 8388607
        %v1348 = vor.u32 %v1347, 8388608
        %v1349 = vsub.s32 0, %v1348
        %v1350 = vadd.s32 %v1345, 1
        %vm1351 = vcmp.gt.s32.totalorder %v1350, 0
        %v1352 = vsel %vm1351, %v1350, 0
        %v1353 = vshrl.u32 %v1352, 5
        %v1354 = vand.u32 %v1352, 31
        %v1355 = vsub.s32 32, %v1354
        %v1356 = vshrl.u32 683565275, %v1355
        %v1357 = vshll.u32 683565275, %v1354
        %v1358 = vshrl.u32 2475754826, %v1355
        %v1359 = vor.u32 %v1357, %v1358
        %v1360 = vshll.u32 2475754826, %v1354
        %v1361 = vshrl.u32 2131351028, %v1355
        %v1362 = vor.u32 %v1360, %v1361
        %v1363 = vshll.u32 2131351028, %v1354
        %v1364 = vshrl.u32 2102212464, %v1355
        %v1365 = vor.u32 %v1363, %v1364
        %v1366 = vshll.u32 2102212464, %v1354
        %v1367 = vshrl.u32 920167782, %v1355
        %v1368 = vor.u32 %v1366, %v1367
        %v1369 = vshll.u32 920167782, %v1354
        %v1370 = vshrl.u32 1326507024, %v1355
        %v1371 = vor.u32 %v1369, %v1370
        %vm1372 = vcmp.lt.s32.totalorder %v1353, 1
        %vm1373 = vcmp.lt.s32.totalorder %v1353, 2
        %vm1374 = vcmp.lt.s32.totalorder %v1353, 3
        %vm1375 = vcmp.lt.s32.totalorder %v1353, 4
        %v1376 = vsel %vm1372, %v1356, %v1359
        %v1377 = vsel %vm1375, %v1365, 2102212464
        %v1378 = vsel %vm1374, %v1362, %v1377
        %v1379 = vsel %vm1373, %v1376, %v1378
        %v1380 = vsel %vm1372, %v1359, %v1362
        %v1381 = vsel %vm1375, %v1368, 920167782
        %v1382 = vsel %vm1374, %v1365, %v1381
        %v1383 = vsel %vm1373, %v1380, %v1382
        %v1384 = vsel %vm1372, %v1362, %v1365
        %v1385 = vsel %vm1375, %v1371, 1326507024
        %v1386 = vsel %vm1374, %v1368, %v1385
        %v1387 = vsel %vm1373, %v1384, %v1386
        %v1388 = vshll.u32 %v1348, 8
        %v1389 = vmul.u32.u64.compose %v1388, %v1387
        %v1390 = vextract.low.u32 %v1389
        %v1391 = vextract.high.u32 %v1389
        %v1392 = vmul.u32.u64.compose %v1388, %v1383
        %v1393 = vextract.low.u32 %v1392
        %v1394 = vextract.high.u32 %v1392
        %v1395 = vmul.u32 %v1388, %v1379
        %v1396 = vadd.s32 %v1391, %v1393
        %vm1397 = vc.u32 %v1391, %v1393
        %v1398 = vadd.s32 %v1394, 1
        %v1399 = vsel %vm1397, %v1398, %v1394
        %v1400 = vadd.s32 %v1395, %v1399
        %v1401 = vadd.s32 %v1400, 536870912
        %v1402 = vshrl.u32 %v1401, 30
        %v1403 = vshll.u32 %v1402, 30
        %v1404 = vsub.s32 %v1400, %v1403
        %vm1405 = vcmp.lt.s32.totalorder %v1404, 0
        %v1406 = vsub.s32 0, %v1404
        %v1407 = vsel %vm1405, %v1406, %v1404
        %v1408 = vclz %v1407
        %v1409 = vsub.s32 %v1408, 2
        %vm1410 = vcmp.gt.s32.totalorder 0, %v1409
        %v1411 = vsel %vm1410, 0, %v1409
        %v1412 = vsub.s32 32, %v1411
        %v1413 = vshll.u32 %v1404, %v1411
        %v1414 = vshrl.u32 %v1396, %v1412
        %v1415 = vor.u32 %v1413, %v1414
        %v1416 = vsub.s32 4294967266, %v1411
        %v1417 = vadd.s32 %v1416, 127
        %v1418 = vshll.u32 %v1417, 23
        %v1419 = vor.u32 4788187, %v1418
        %v1420 = vand.u32 2147483647, %v1419
        %v1422 = vcvt.s32.f32 %v1415
        %v1423 = vmul.f32 %v1422, %v1420
        %v1424 = vxor.u32 %v1423, 2147483648
        %v1425 = vsel %vm1342, %v1424, %v1423
        %v1426 = vsub.s32 4, %v1402
        %v1427 = vsel %vm1342, %v1426, %v1402
        %v1428 = vsel %vm1341, %v304, %v1425
        %v1429 = vsel %vm1341, 0, %v1427
        %v1430 = vcosq.f32.pop %v1428
        %v1431 = vsinq.f32.pop %v1428
        %vm1432 = vweird.f32 %v304
        %v1433 = vand.u32 %v1429, 3
        %vm1434 = vcmp.lt.s32.totalorder %v1433, 2
        %vm1435 = vcmp.eq.s32.totalorder %v1433, 0
        %v1436 = vxor.u32 %v1431, 2147483648
        %v1437 = vsel %vm1435, %v1430, %v1436
        %vm1438 = vcmp.eq.s32.totalorder %v1433, 2
        %v1439 = vxor.u32 %v1430, 2147483648
        %v1440 = vsel %vm1438, %v1439, %v1431
        %v1441 = vsel %vm1434, %v1437, %v1440
        %v1442 = vsel %vm1432, nan, %v1441
        %v1443 = vand.u32 2147483647, %v305
        %vm1444 = vcmp.le.f32.partialorder %v1443, 0.7853982
        %vm1445 = vcmp.lt.s32.totalorder %v305, 0
        %v1446 = vand.u32 %v305, 2139095040
        %v1447 = vshrl.u32 %v1446, 23
        %v1448 = vsub.s32 %v1447, 127
        %v1449 = vand.u32 2147483647, %v305
        %v1450 = vand.u32 %v1449, 8388607
        %v1451 = vor.u32 %v1450, 8388608
        %v1452 = vsub.s32 0, %v1451
        %v1453 = vadd.s32 %v1448, 1
        %vm1454 = vcmp.gt.s32.totalorder %v1453, 0
        %v1455 = vsel %vm1454, %v1453, 0
        %v1456 = vshrl.u32 %v1455, 5
        %v1457 = vand.u32 %v1455, 31
        %v1458 = vsub.s32 32, %v1457
        %v1459 = vshrl.u32 683565275, %v1458
        %v1460 = vshll.u32 683565275, %v1457
        %v1461 = vshrl.u32 2475754826, %v1458
        %v1462 = vor.u32 %v1460, %v1461
        %v1463 = vshll.u32 2475754826, %v1457
        %v1464 = vshrl.u32 2131351028, %v1458
        %v1465 = vor.u32 %v1463, %v1464
        %v1466 = vshll.u32 2131351028, %v1457
        %v1467 = vshrl.u32 2102212464, %v1458
        %v1468 = vor.u32 %v1466, %v1467
        %v1469 = vshll.u32 2102212464, %v1457
        %v1470 = vshrl.u32 920167782, %v1458
        %v1471 = vor.u32 %v1469, %v1470
        %v1472 = vshll.u32 920167782, %v1457
        %v1473 = vshrl.u32 1326507024, %v1458
        %v1474 = vor.u32 %v1472, %v1473
        %vm1475 = vcmp.lt.s32.totalorder %v1456, 1
        %vm1476 = vcmp.lt.s32.totalorder %v1456, 2
        %vm1477 = vcmp.lt.s32.totalorder %v1456, 3
        %vm1478 = vcmp.lt.s32.totalorder %v1456, 4
        %v1479 = vsel %vm1475, %v1459, %v1462
        %v1480 = vsel %vm1478, %v1468, 2102212464
        %v1481 = vsel %vm1477, %v1465, %v1480
        %v1482 = vsel %vm1476, %v1479, %v1481
        %v1483 = vsel %vm1475, %v1462, %v1465
        %v1484 = vsel %vm1478, %v1471, 920167782
        %v1485 = vsel %vm1477, %v1468, %v1484
        %v1486 = vsel %vm1476, %v1483, %v1485
        %v1487 = vsel %vm1475, %v1465, %v1468
        %v1488 = vsel %vm1478, %v1474, 1326507024
        %v1489 = vsel %vm1477, %v1471, %v1488
        %v1490 = vsel %vm1476, %v1487, %v1489
        %v1491 = vshll.u32 %v1451, 8
        %v1492 = vmul.u32.u64.compose %v1491, %v1490
        %v1493 = vextract.low.u32 %v1492
        %v1494 = vextract.high.u32 %v1492
        %v1495 = vmul.u32.u64.compose %v1491, %v1486
        %v1496 = vextract.low.u32 %v1495
        %v1497 = vextract.high.u32 %v1495
        %v1498 = vmul.u32 %v1491, %v1482
        %v1499 = vadd.s32 %v1494, %v1496
        %vm1500 = vc.u32 %v1494, %v1496
        %v1501 = vadd.s32 %v1497, 1
        %v1502 = vsel %vm1500, %v1501, %v1497
        %v1503 = vadd.s32 %v1498, %v1502
        %v1504 = vadd.s32 %v1503, 536870912
        %v1505 = vshrl.u32 %v1504, 30
        %v1506 = vshll.u32 %v1505, 30
        %v1507 = vsub.s32 %v1503, %v1506
        %vm1508 = vcmp.lt.s32.totalorder %v1507, 0
        %v1509 = vsub.s32 0, %v1507
        %v1510 = vsel %vm1508, %v1509, %v1507
        %v1511 = vclz %v1510
        %v1512 = vsub.s32 %v1511, 2
        %vm1513 = vcmp.gt.s32.totalorder 0, %v1512
        %v1514 = vsel %vm1513, 0, %v1512
        %v1515 = vsub.s32 32, %v1514
        %v1516 = vshll.u32 %v1507, %v1514
        %v1517 = vshrl.u32 %v1499, %v1515
        %v1518 = vor.u32 %v1516, %v1517
        %v1519 = vsub.s32 4294967266, %v1514
        %v1520 = vadd.s32 %v1519, 127
        %v1521 = vshll.u32 %v1520, 23
        %v1522 = vor.u32 4788187, %v1521
        %v1523 = vand.u32 2147483647, %v1522
        %v1525 = vcvt.s32.f32 %v1518
        %v1526 = vmul.f32 %v1525, %v1523
        %v1527 = vxor.u32 %v1526, 2147483648
        %v1528 = vsel %vm1445, %v1527, %v1526
        %v1529 = vsub.s32 4, %v1505
        %v1530 = vsel %vm1445, %v1529, %v1505
        %v1531 = vsel %vm1444, %v305, %v1528
        %v1532 = vsel %vm1444, 0, %v1530
        %v1533 = vcosq.f32.pop %v1531
        %v1534 = vsinq.f32.pop %v1531
        %vm1535 = vweird.f32 %v305
        %v1536 = vand.u32 %v1532, 3
        %vm1537 = vcmp.lt.s32.totalorder %v1536, 2
        %vm1538 = vcmp.eq.s32.totalorder %v1536, 0
        %v1539 = vxor.u32 %v1534, 2147483648
        %v1540 = vsel %vm1538, %v1533, %v1539
        %vm1541 = vcmp.eq.s32.totalorder %v1536, 2
        %v1542 = vxor.u32 %v1533, 2147483648
        %v1543 = vsel %vm1541, %v1542, %v1534
        %v1544 = vsel %vm1537, %v1540, %v1543
        %v1545 = vsel %vm1535, nan, %v1544
        %v1546 = vand.u32 2147483647, %v306
        %vm1547 = vcmp.le.f32.partialorder %v1546, 0.7853982
        %vm1548 = vcmp.lt.s32.totalorder %v306, 0
        %v1549 = vand.u32 %v306, 2139095040
        %v1550 = vshrl.u32 %v1549, 23
        %v1551 = vsub.s32 %v1550, 127
        %v1552 = vand.u32 2147483647, %v306
        %v1553 = vand.u32 %v1552, 8388607
        %v1554 = vor.u32 %v1553, 8388608
        %v1555 = vsub.s32 0, %v1554
        %v1556 = vadd.s32 %v1551, 1
        %vm1557 = vcmp.gt.s32.totalorder %v1556, 0
        %v1558 = vsel %vm1557, %v1556, 0
        %v1559 = vshrl.u32 %v1558, 5
        %v1560 = vand.u32 %v1558, 31
        %v1561 = vsub.s32 32, %v1560
        %v1562 = vshrl.u32 683565275, %v1561
        %v1563 = vshll.u32 683565275, %v1560
        %v1564 = vshrl.u32 2475754826, %v1561
        %v1565 = vor.u32 %v1563, %v1564
        %v1566 = vshll.u32 2475754826, %v1560
        %v1567 = vshrl.u32 2131351028, %v1561
        %v1568 = vor.u32 %v1566, %v1567
        %v1569 = vshll.u32 2131351028, %v1560
        %v1570 = vshrl.u32 2102212464, %v1561
        %v1571 = vor.u32 %v1569, %v1570
        %v1572 = vshll.u32 2102212464, %v1560
        %v1573 = vshrl.u32 920167782, %v1561
        %v1574 = vor.u32 %v1572, %v1573
        %v1575 = vshll.u32 920167782, %v1560
        %v1576 = vshrl.u32 1326507024, %v1561
        %v1577 = vor.u32 %v1575, %v1576
        %vm1578 = vcmp.lt.s32.totalorder %v1559, 1
        %vm1579 = vcmp.lt.s32.totalorder %v1559, 2
        %vm1580 = vcmp.lt.s32.totalorder %v1559, 3
        %vm1581 = vcmp.lt.s32.totalorder %v1559, 4
        %v1582 = vsel %vm1578, %v1562, %v1565
        %v1583 = vsel %vm1581, %v1571, 2102212464
        %v1584 = vsel %vm1580, %v1568, %v1583
        %v1585 = vsel %vm1579, %v1582, %v1584
        %v1586 = vsel %vm1578, %v1565, %v1568
        %v1587 = vsel %vm1581, %v1574, 920167782
        %v1588 = vsel %vm1580, %v1571, %v1587
        %v1589 = vsel %vm1579, %v1586, %v1588
        %v1590 = vsel %vm1578, %v1568, %v1571
        %v1591 = vsel %vm1581, %v1577, 1326507024
        %v1592 = vsel %vm1580, %v1574, %v1591
        %v1593 = vsel %vm1579, %v1590, %v1592
        %v1594 = vshll.u32 %v1554, 8
        %v1595 = vmul.u32.u64.compose %v1594, %v1593
        %v1596 = vextract.low.u32 %v1595
        %v1597 = vextract.high.u32 %v1595
        %v1598 = vmul.u32.u64.compose %v1594, %v1589
        %v1599 = vextract.low.u32 %v1598
        %v1600 = vextract.high.u32 %v1598
        %v1601 = vmul.u32 %v1594, %v1585
        %v1602 = vadd.s32 %v1597, %v1599
        %vm1603 = vc.u32 %v1597, %v1599
        %v1604 = vadd.s32 %v1600, 1
        %v1605 = vsel %vm1603, %v1604, %v1600
        %v1606 = vadd.s32 %v1601, %v1605
        %v1607 = vadd.s32 %v1606, 536870912
        %v1608 = vshrl.u32 %v1607, 30
        %v1609 = vshll.u32 %v1608, 30
        %v1610 = vsub.s32 %v1606, %v1609
        %vm1611 = vcmp.lt.s32.totalorder %v1610, 0
        %v1612 = vsub.s32 0, %v1610
        %v1613 = vsel %vm1611, %v1612, %v1610
        %v1614 = vclz %v1613
        %v1615 = vsub.s32 %v1614, 2
        %vm1616 = vcmp.gt.s32.totalorder 0, %v1615
        %v1617 = vsel %vm1616, 0, %v1615
        %v1618 = vsub.s32 32, %v1617
        %v1619 = vshll.u32 %v1610, %v1617
        %v1620 = vshrl.u32 %v1602, %v1618
        %v1621 = vor.u32 %v1619, %v1620
        %v1622 = vsub.s32 4294967266, %v1617
        %v1623 = vadd.s32 %v1622, 127
        %v1624 = vshll.u32 %v1623, 23
        %v1625 = vor.u32 4788187, %v1624
        %v1626 = vand.u32 2147483647, %v1625
        %v1628 = vcvt.s32.f32 %v1621
        %v1629 = vmul.f32 %v1628, %v1626
        %v1630 = vxor.u32 %v1629, 2147483648
        %v1631 = vsel %vm1548, %v1630, %v1629
        %v1632 = vsub.s32 4, %v1608
        %v1633 = vsel %vm1548, %v1632, %v1608
        %v1634 = vsel %vm1547, %v306, %v1631
        %v1635 = vsel %vm1547, 0, %v1633
        %v1636 = vcosq.f32.pop %v1634
        %v1637 = vsinq.f32.pop %v1634
        %vm1638 = vweird.f32 %v306
        %v1639 = vand.u32 %v1635, 3
        %vm1640 = vcmp.lt.s32.totalorder %v1639, 2
        %vm1641 = vcmp.eq.s32.totalorder %v1639, 0
        %v1642 = vxor.u32 %v1637, 2147483648
        %v1643 = vsel %vm1641, %v1636, %v1642
        %vm1644 = vcmp.eq.s32.totalorder %v1639, 2
        %v1645 = vxor.u32 %v1636, 2147483648
        %v1646 = vsel %vm1644, %v1645, %v1637
        %v1647 = vsel %vm1640, %v1643, %v1646
        %v1648 = vsel %vm1638, nan, %v1647
        %v1649 = vand.u32 2147483647, %v307
        %vm1650 = vcmp.le.f32.partialorder %v1649, 0.7853982
        %vm1651 = vcmp.lt.s32.totalorder %v307, 0
        %v1652 = vand.u32 %v307, 2139095040
        %v1653 = vshrl.u32 %v1652, 23
        %v1654 = vsub.s32 %v1653, 127
        %v1655 = vand.u32 2147483647, %v307
        %v1656 = vand.u32 %v1655, 8388607
        %v1657 = vor.u32 %v1656, 8388608
        %v1658 = vsub.s32 0, %v1657
        %v1659 = vadd.s32 %v1654, 1
        %vm1660 = vcmp.gt.s32.totalorder %v1659, 0
        %v1661 = vsel %vm1660, %v1659, 0
        %v1662 = vshrl.u32 %v1661, 5
        %v1663 = vand.u32 %v1661, 31
        %v1664 = vsub.s32 32, %v1663
        %v1665 = vshrl.u32 683565275, %v1664
        %v1666 = vshll.u32 683565275, %v1663
        %v1667 = vshrl.u32 2475754826, %v1664
        %v1668 = vor.u32 %v1666, %v1667
        %v1669 = vshll.u32 2475754826, %v1663
        %v1670 = vshrl.u32 2131351028, %v1664
        %v1671 = vor.u32 %v1669, %v1670
        %v1672 = vshll.u32 2131351028, %v1663
        %v1673 = vshrl.u32 2102212464, %v1664
        %v1674 = vor.u32 %v1672, %v1673
        %v1675 = vshll.u32 2102212464, %v1663
        %v1676 = vshrl.u32 920167782, %v1664
        %v1677 = vor.u32 %v1675, %v1676
        %v1678 = vshll.u32 920167782, %v1663
        %v1679 = vshrl.u32 1326507024, %v1664
        %v1680 = vor.u32 %v1678, %v1679
        %vm1681 = vcmp.lt.s32.totalorder %v1662, 1
        %vm1682 = vcmp.lt.s32.totalorder %v1662, 2
        %vm1683 = vcmp.lt.s32.totalorder %v1662, 3
        %vm1684 = vcmp.lt.s32.totalorder %v1662, 4
        %v1685 = vsel %vm1681, %v1665, %v1668
        %v1686 = vsel %vm1684, %v1674, 2102212464
        %v1687 = vsel %vm1683, %v1671, %v1686
        %v1688 = vsel %vm1682, %v1685, %v1687
        %v1689 = vsel %vm1681, %v1668, %v1671
        %v1690 = vsel %vm1684, %v1677, 920167782
        %v1691 = vsel %vm1683, %v1674, %v1690
        %v1692 = vsel %vm1682, %v1689, %v1691
        %v1693 = vsel %vm1681, %v1671, %v1674
        %v1694 = vsel %vm1684, %v1680, 1326507024
        %v1695 = vsel %vm1683, %v1677, %v1694
        %v1696 = vsel %vm1682, %v1693, %v1695
        %v1697 = vshll.u32 %v1657, 8
        %v1698 = vmul.u32.u64.compose %v1697, %v1696
        %v1699 = vextract.low.u32 %v1698
        %v1700 = vextract.high.u32 %v1698
        %v1701 = vmul.u32.u64.compose %v1697, %v1692
        %v1702 = vextract.low.u32 %v1701
        %v1703 = vextract.high.u32 %v1701
        %v1704 = vmul.u32 %v1697, %v1688
        %v1705 = vadd.s32 %v1700, %v1702
        %vm1706 = vc.u32 %v1700, %v1702
        %v1707 = vadd.s32 %v1703, 1
        %v1708 = vsel %vm1706, %v1707, %v1703
        %v1709 = vadd.s32 %v1704, %v1708
        %v1710 = vadd.s32 %v1709, 536870912
        %v1711 = vshrl.u32 %v1710, 30
        %v1712 = vshll.u32 %v1711, 30
        %v1713 = vsub.s32 %v1709, %v1712
        %vm1714 = vcmp.lt.s32.totalorder %v1713, 0
        %v1715 = vsub.s32 0, %v1713
        %v1716 = vsel %vm1714, %v1715, %v1713
        %v1717 = vclz %v1716
        %v1718 = vsub.s32 %v1717, 2
        %vm1719 = vcmp.gt.s32.totalorder 0, %v1718
        %v1720 = vsel %vm1719, 0, %v1718
        %v1721 = vsub.s32 32, %v1720
        %v1722 = vshll.u32 %v1713, %v1720
        %v1723 = vshrl.u32 %v1705, %v1721
        %v1724 = vor.u32 %v1722, %v1723
        %v1725 = vsub.s32 4294967266, %v1720
        %v1726 = vadd.s32 %v1725, 127
        %v1727 = vshll.u32 %v1726, 23
        %v1728 = vor.u32 4788187, %v1727
        %v1729 = vand.u32 2147483647, %v1728
        %v1731 = vcvt.s32.f32 %v1724
        %v1732 = vmul.f32 %v1731, %v1729
        %v1733 = vxor.u32 %v1732, 2147483648
        %v1734 = vsel %vm1651, %v1733, %v1732
        %v1735 = vsub.s32 4, %v1711
        %v1736 = vsel %vm1651, %v1735, %v1711
        %v1737 = vsel %vm1650, %v307, %v1734
        %v1738 = vsel %vm1650, 0, %v1736
        %v1739 = vcosq.f32.pop %v1737
        %v1740 = vsinq.f32.pop %v1737
        %vm1741 = vweird.f32 %v307
        %v1742 = vand.u32 %v1738, 3
        %vm1743 = vcmp.lt.s32.totalorder %v1742, 2
        %vm1744 = vcmp.eq.s32.totalorder %v1742, 0
        %v1745 = vxor.u32 %v1740, 2147483648
        %v1746 = vsel %vm1744, %v1739, %v1745
        %vm1747 = vcmp.eq.s32.totalorder %v1742, 2
        %v1748 = vxor.u32 %v1739, 2147483648
        %v1749 = vsel %vm1747, %v1748, %v1740
        %v1750 = vsel %vm1743, %v1746, %v1749
        %v1751 = vsel %vm1741, nan, %v1750
        %v1752 = vand.u32 2147483647, %v308
        %vm1753 = vcmp.le.f32.partialorder %v1752, 0.7853982
        %vm1754 = vcmp.lt.s32.totalorder %v308, 0
        %v1755 = vand.u32 %v308, 2139095040
        %v1756 = vshrl.u32 %v1755, 23
        %v1757 = vsub.s32 %v1756, 127
        %v1758 = vand.u32 2147483647, %v308
        %v1759 = vand.u32 %v1758, 8388607
        %v1760 = vor.u32 %v1759, 8388608
        %v1761 = vsub.s32 0, %v1760
        %v1762 = vadd.s32 %v1757, 1
        %vm1763 = vcmp.gt.s32.totalorder %v1762, 0
        %v1764 = vsel %vm1763, %v1762, 0
        %v1765 = vshrl.u32 %v1764, 5
        %v1766 = vand.u32 %v1764, 31
        %v1767 = vsub.s32 32, %v1766
        %v1768 = vshrl.u32 683565275, %v1767
        %v1769 = vshll.u32 683565275, %v1766
        %v1770 = vshrl.u32 2475754826, %v1767
        %v1771 = vor.u32 %v1769, %v1770
        %v1772 = vshll.u32 2475754826, %v1766
        %v1773 = vshrl.u32 2131351028, %v1767
        %v1774 = vor.u32 %v1772, %v1773
        %v1775 = vshll.u32 2131351028, %v1766
        %v1776 = vshrl.u32 2102212464, %v1767
        %v1777 = vor.u32 %v1775, %v1776
        %v1778 = vshll.u32 2102212464, %v1766
        %v1779 = vshrl.u32 920167782, %v1767
        %v1780 = vor.u32 %v1778, %v1779
        %v1781 = vshll.u32 920167782, %v1766
        %v1782 = vshrl.u32 1326507024, %v1767
        %v1783 = vor.u32 %v1781, %v1782
        %vm1784 = vcmp.lt.s32.totalorder %v1765, 1
        %vm1785 = vcmp.lt.s32.totalorder %v1765, 2
        %vm1786 = vcmp.lt.s32.totalorder %v1765, 3
        %vm1787 = vcmp.lt.s32.totalorder %v1765, 4
        %v1788 = vsel %vm1784, %v1768, %v1771
        %v1789 = vsel %vm1787, %v1777, 2102212464
        %v1790 = vsel %vm1786, %v1774, %v1789
        %v1791 = vsel %vm1785, %v1788, %v1790
        %v1792 = vsel %vm1784, %v1771, %v1774
        %v1793 = vsel %vm1787, %v1780, 920167782
        %v1794 = vsel %vm1786, %v1777, %v1793
        %v1795 = vsel %vm1785, %v1792, %v1794
        %v1796 = vsel %vm1784, %v1774, %v1777
        %v1797 = vsel %vm1787, %v1783, 1326507024
        %v1798 = vsel %vm1786, %v1780, %v1797
        %v1799 = vsel %vm1785, %v1796, %v1798
        %v1800 = vshll.u32 %v1760, 8
        %v1801 = vmul.u32.u64.compose %v1800, %v1799
        %v1802 = vextract.low.u32 %v1801
        %v1803 = vextract.high.u32 %v1801
        %v1804 = vmul.u32.u64.compose %v1800, %v1795
        %v1805 = vextract.low.u32 %v1804
        %v1806 = vextract.high.u32 %v1804
        %v1807 = vmul.u32 %v1800, %v1791
        %v1808 = vadd.s32 %v1803, %v1805
        %vm1809 = vc.u32 %v1803, %v1805
        %v1810 = vadd.s32 %v1806, 1
        %v1811 = vsel %vm1809, %v1810, %v1806
        %v1812 = vadd.s32 %v1807, %v1811
        %v1813 = vadd.s32 %v1812, 536870912
        %v1814 = vshrl.u32 %v1813, 30
        %v1815 = vshll.u32 %v1814, 30
        %v1816 = vsub.s32 %v1812, %v1815
        %vm1817 = vcmp.lt.s32.totalorder %v1816, 0
        %v1818 = vsub.s32 0, %v1816
        %v1819 = vsel %vm1817, %v1818, %v1816
        %v1820 = vclz %v1819
        %v1821 = vsub.s32 %v1820, 2
        %vm1822 = vcmp.gt.s32.totalorder 0, %v1821
        %v1823 = vsel %vm1822, 0, %v1821
        %v1824 = vsub.s32 32, %v1823
        %v1825 = vshll.u32 %v1816, %v1823
        %v1826 = vshrl.u32 %v1808, %v1824
        %v1827 = vor.u32 %v1825, %v1826
        %v1828 = vsub.s32 4294967266, %v1823
        %v1829 = vadd.s32 %v1828, 127
        %v1830 = vshll.u32 %v1829, 23
        %v1831 = vor.u32 4788187, %v1830
        %v1832 = vand.u32 2147483647, %v1831
        %v1834 = vcvt.s32.f32 %v1827
        %v1835 = vmul.f32 %v1834, %v1832
        %v1836 = vxor.u32 %v1835, 2147483648
        %v1837 = vsel %vm1754, %v1836, %v1835
        %v1838 = vsub.s32 4, %v1814
        %v1839 = vsel %vm1754, %v1838, %v1814
        %v1840 = vsel %vm1753, %v308, %v1837
        %v1841 = vsel %vm1753, 0, %v1839
        %v1842 = vcosq.f32.pop %v1840
        %v1843 = vsinq.f32.pop %v1840
        %vm1844 = vweird.f32 %v308
        %v1845 = vand.u32 %v1841, 3
        %vm1846 = vcmp.lt.s32.totalorder %v1845, 2
        %vm1847 = vcmp.eq.s32.totalorder %v1845, 0
        %v1848 = vxor.u32 %v1843, 2147483648
        %v1849 = vsel %vm1847, %v1842, %v1848
        %vm1850 = vcmp.eq.s32.totalorder %v1845, 2
        %v1851 = vxor.u32 %v1842, 2147483648
        %v1852 = vsel %vm1850, %v1851, %v1843
        %v1853 = vsel %vm1846, %v1849, %v1852
        %v1854 = vsel %vm1844, nan, %v1853
        %v1855 = vand.u32 2147483647, %v309
        %vm1856 = vcmp.le.f32.partialorder %v1855, 0.7853982
        %vm1857 = vcmp.lt.s32.totalorder %v309, 0
        %v1858 = vand.u32 %v309, 2139095040
        %v1859 = vshrl.u32 %v1858, 23
        %v1860 = vsub.s32 %v1859, 127
        %v1861 = vand.u32 2147483647, %v309
        %v1862 = vand.u32 %v1861, 8388607
        %v1863 = vor.u32 %v1862, 8388608
        %v1864 = vsub.s32 0, %v1863
        %v1865 = vadd.s32 %v1860, 1
        %vm1866 = vcmp.gt.s32.totalorder %v1865, 0
        %v1867 = vsel %vm1866, %v1865, 0
        %v1868 = vshrl.u32 %v1867, 5
        %v1869 = vand.u32 %v1867, 31
        %v1870 = vsub.s32 32, %v1869
        %v1871 = vshrl.u32 683565275, %v1870
        %v1872 = vshll.u32 683565275, %v1869
        %v1873 = vshrl.u32 2475754826, %v1870
        %v1874 = vor.u32 %v1872, %v1873
        %v1875 = vshll.u32 2475754826, %v1869
        %v1876 = vshrl.u32 2131351028, %v1870
        %v1877 = vor.u32 %v1875, %v1876
        %v1878 = vshll.u32 2131351028, %v1869
        %v1879 = vshrl.u32 2102212464, %v1870
        %v1880 = vor.u32 %v1878, %v1879
        %v1881 = vshll.u32 2102212464, %v1869
        %v1882 = vshrl.u32 920167782, %v1870
        %v1883 = vor.u32 %v1881, %v1882
        %v1884 = vshll.u32 920167782, %v1869
        %v1885 = vshrl.u32 1326507024, %v1870
        %v1886 = vor.u32 %v1884, %v1885
        %vm1887 = vcmp.lt.s32.totalorder %v1868, 1
        %vm1888 = vcmp.lt.s32.totalorder %v1868, 2
        %vm1889 = vcmp.lt.s32.totalorder %v1868, 3
        %vm1890 = vcmp.lt.s32.totalorder %v1868, 4
        %v1891 = vsel %vm1887, %v1871, %v1874
        %v1892 = vsel %vm1890, %v1880, 2102212464
        %v1893 = vsel %vm1889, %v1877, %v1892
        %v1894 = vsel %vm1888, %v1891, %v1893
        %v1895 = vsel %vm1887, %v1874, %v1877
        %v1896 = vsel %vm1890, %v1883, 920167782
        %v1897 = vsel %vm1889, %v1880, %v1896
        %v1898 = vsel %vm1888, %v1895, %v1897
        %v1899 = vsel %vm1887, %v1877, %v1880
        %v1900 = vsel %vm1890, %v1886, 1326507024
        %v1901 = vsel %vm1889, %v1883, %v1900
        %v1902 = vsel %vm1888, %v1899, %v1901
        %v1903 = vshll.u32 %v1863, 8
        %v1904 = vmul.u32.u64.compose %v1903, %v1902
        %v1905 = vextract.low.u32 %v1904
        %v1906 = vextract.high.u32 %v1904
        %v1907 = vmul.u32.u64.compose %v1903, %v1898
        %v1908 = vextract.low.u32 %v1907
        %v1909 = vextract.high.u32 %v1907
        %v1910 = vmul.u32 %v1903, %v1894
        %v1911 = vadd.s32 %v1906, %v1908
        %vm1912 = vc.u32 %v1906, %v1908
        %v1913 = vadd.s32 %v1909, 1
        %v1914 = vsel %vm1912, %v1913, %v1909
        %v1915 = vadd.s32 %v1910, %v1914
        %v1916 = vadd.s32 %v1915, 536870912
        %v1917 = vshrl.u32 %v1916, 30
        %v1918 = vshll.u32 %v1917, 30
        %v1919 = vsub.s32 %v1915, %v1918
        %vm1920 = vcmp.lt.s32.totalorder %v1919, 0
        %v1921 = vsub.s32 0, %v1919
        %v1922 = vsel %vm1920, %v1921, %v1919
        %v1923 = vclz %v1922
        %v1924 = vsub.s32 %v1923, 2
        %vm1925 = vcmp.gt.s32.totalorder 0, %v1924
        %v1926 = vsel %vm1925, 0, %v1924
        %v1927 = vsub.s32 32, %v1926
        %v1928 = vshll.u32 %v1919, %v1926
        %v1929 = vshrl.u32 %v1911, %v1927
        %v1930 = vor.u32 %v1928, %v1929
        %v1931 = vsub.s32 4294967266, %v1926
        %v1932 = vadd.s32 %v1931, 127
        %v1933 = vshll.u32 %v1932, 23
        %v1934 = vor.u32 4788187, %v1933
        %v1935 = vand.u32 2147483647, %v1934
        %v1937 = vcvt.s32.f32 %v1930
        %v1938 = vmul.f32 %v1937, %v1935
        %v1939 = vxor.u32 %v1938, 2147483648
        %v1940 = vsel %vm1857, %v1939, %v1938
        %v1941 = vsub.s32 4, %v1917
        %v1942 = vsel %vm1857, %v1941, %v1917
        %v1943 = vsel %vm1856, %v309, %v1940
        %v1944 = vsel %vm1856, 0, %v1942
        %v1945 = vcosq.f32.pop %v1943
        %v1946 = vsinq.f32.pop %v1943
        %vm1947 = vweird.f32 %v309
        %v1948 = vand.u32 %v1944, 3
        %vm1949 = vcmp.lt.s32.totalorder %v1948, 2
        %vm1950 = vcmp.eq.s32.totalorder %v1948, 0
        %v1951 = vxor.u32 %v1946, 2147483648
        %v1952 = vsel %vm1950, %v1945, %v1951
        %vm1953 = vcmp.eq.s32.totalorder %v1948, 2
        %v1954 = vxor.u32 %v1945, 2147483648
        %v1955 = vsel %vm1953, %v1954, %v1946
        %v1956 = vsel %vm1949, %v1952, %v1955
        %v1957 = vsel %vm1947, nan, %v1956
        %v1958 = vld [vmem:[%s2] sm:$0xff]
        %v1959 = vld [vmem:[%s2 + $0x8] sm:$0xff]
        %v1960 = vld [vmem:[%s2 + $0x10] sm:$0xff]
        %v1961 = vld [vmem:[%s2 + $0x18] sm:$0xff]
        %v1962 = vld [vmem:[%s2 + $0x20] sm:$0xff]
        %v1963 = vld [vmem:[%s2 + $0x28] sm:$0xff]
        %v1964 = vld [vmem:[%s2 + $0x30] sm:$0xff]
        %v1965 = vld [vmem:[%s2 + $0x38] sm:$0xff]
        %vm1966 = vcmask 523264
        %v1968 = vsel %vm1966, %v412, 0
        %v1971 = vsel %vm1966, %v515, 0
        %v1974 = vsel %vm1966, %v618, 0
        %v1977 = vsel %vm1966, %v721, 0
        %v1980 = vsel %vm1966, %v824, 0
        %v1983 = vsel %vm1966, %v927, 0
        %v1986 = vsel %vm1966, %v1030, 0
        %v1989 = vsel %vm1966, %v1133, 0
        %v1992 = vsel %vm1966, %v1236, 0
        %v1995 = vsel %vm1966, %v1339, 0
        %v1998 = vsel %vm1966, %v1442, 0
        %v2001 = vsel %vm1966, %v1545, 0
        %v2004 = vsel %vm1966, %v1648, 0
        %v2007 = vsel %vm1966, %v1751, 0
        %v2010 = vsel %vm1966, %v1854, 0
        %v2013 = vsel %vm1966, %v1957, 0
        %2015 = vmatprep.subr.mxu0 0.0
        %v2016 = vand.u32 %v1958, 4294901760
        %2017 = vmatpush1.msra.mxu0 %v2016
        %2018 = vmatprep.subr.mxu0 0.0
        %v2019 = vand.u32 %v1959, 4294901760
        %2020 = vmatpush1.msra.mxu0 %v2019
        %2021 = vmatprep.subr.mxu0 0.0
        %v2022 = vand.u32 %v1960, 4294901760
        %2023 = vmatpush1.msra.mxu0 %v2022
        %2024 = vmatprep.subr.mxu0 0.0
        %v2025 = vand.u32 %v1961, 4294901760
        %2026 = vmatpush1.msra.mxu0 %v2025
        %2027 = vmatprep.subr.mxu0 0.0
        %v2028 = vand.u32 %v1962, 4294901760
        %2029 = vmatpush1.msra.mxu0 %v2028
        %2030 = vmatprep.subr.mxu0 0.0
        %v2031 = vand.u32 %v1963, 4294901760
        %2032 = vmatpush1.msra.mxu0 %v2031
        %2033 = vmatprep.subr.mxu0 0.0
        %v2034 = vand.u32 %v1964, 4294901760
        %2035 = vmatpush1.msra.mxu0 %v2034
        %2036 = vmatprep.subr.mxu0 0.0
        %v2037 = vand.u32 %v1965, 4294901760
        %2038 = vmatpush1.msra.mxu0 %v2037
        %2039 = vmatprep.subr.mxu0 0.0
        %2040 = vmatpush1.msra.mxu0 0.0
        %2041 = vmatprep.subr.mxu0 0.0
        %2042 = vmatpush1.msra.mxu0 0.0
        %2043 = vmatprep.subr.mxu0 0.0
        %2044 = vmatpush1.msra.mxu0 0.0
        %2045 = vmatprep.subr.mxu0 0.0
        %2046 = vmatpush1.msra.mxu0 0.0
        %2047 = vmatprep.subr.mxu0 0.0
        %2048 = vmatpush1.msra.mxu0 0.0
        %2049 = vmatprep.subr.mxu0 0.0
        %2050 = vmatpush1.msra.mxu0 0.0
        %2051 = vmatprep.subr.mxu0 0.0
        %2052 = vmatpush1.msra.mxu0 0.0
        %2053 = vmatprep.subr.mxu0 0.0
        %2054 = vmatpush1.msra.mxu0 0.0
        %2055 = vmatprep.subr.mxu0 0.0
        %2056 = vmatpush1.msra.mxu0 0.0
        %2057 = vmatprep.subr.mxu0 0.0
        %2058 = vmatpush1.msra.mxu0 0.0
        %2059 = vmatprep.subr.mxu0 0.0
        %2060 = vmatpush1.msra.mxu0 0.0
        %2061 = vmatprep.subr.mxu0 0.0
        %2062 = vmatpush1.msra.mxu0 0.0
        %2063 = vmatprep.subr.mxu0 0.0
        %2064 = vmatpush1.msra.mxu0 0.0
        %2065 = vmatprep.subr.mxu0 0.0
        %2066 = vmatpush1.msra.mxu0 0.0
        %2067 = vmatprep.subr.mxu0 0.0
        %2068 = vmatpush1.msra.mxu0 0.0
        %2069 = vmatprep.subr.mxu0 0.0
        %2070 = vmatpush1.msra.mxu0 0.0
        %2071 = vmatprep.subr.mxu0 0.0
        %2072 = vmatpush1.msra.mxu0 0.0
        %2073 = vmatprep.subr.mxu0 0.0
        %2074 = vmatpush1.msra.mxu0 0.0
        %2075 = vmatprep.subr.mxu0 0.0
        %2076 = vmatpush1.msra.mxu0 0.0
        %2077 = vmatprep.subr.mxu0 0.0
        %2078 = vmatpush1.msra.mxu0 0.0
        %2079 = vmatprep.subr.mxu0 0.0
        %2080 = vmatpush1.msra.mxu0 0.0
        %2081 = vmatprep.subr.mxu0 0.0
        %2082 = vmatpush1.msra.mxu0 0.0
        %2083 = vmatprep.subr.mxu0 0.0
        %2084 = vmatpush1.msra.mxu0 0.0
        %2085 = vmatprep.subr.mxu0 0.0
        %2086 = vmatpush1.msra.mxu0 0.0
        %2087 = vmatprep.mubr.f32.mxu0 0.0
        %v2088 = vand.u32 %v1968, 4294901760
        %v2089 = vsub.f32 %v1968, %v2088
        %v2090 = vand.u32 %v2089, 4294901760
        %v2091 = vsub.f32 %v2089, %v2090
        %v2092 = vand.u32 %v2091, 4294901760
        %2093 = vmatmul.mubr.f32.gmra.mrb[0].mxu0 %v2092
        %v2094 = vpop.f32.mrb[0].mxu0
        %v2095 = vadd.f32 0.0, %v2094
        %v2096 = vpop.f32.mrb[0].mxu0
        %2097 = vmatprep.mubr.f32.mxu0 0.0
        %v2098 = vand.u32 %v1971, 4294901760
        %v2099 = vsub.f32 %v1971, %v2098
        %v2100 = vand.u32 %v2099, 4294901760
        %v2101 = vsub.f32 %v2099, %v2100
        %v2102 = vand.u32 %v2101, 4294901760
        %2103 = vmatmul.mubr.f32.gmra.mrb[0].mxu0 %v2102
        %v2104 = vpop.f32.mrb[0].mxu0
        %v2105 = vadd.f32 0.0, %v2104
        %v2106 = vpop.f32.mrb[0].mxu0
        %2107 = vmatprep.mubr.f32.mxu0 0.0
        %v2108 = vand.u32 %v1974, 4294901760
        %v2109 = vsub.f32 %v1974, %v2108
        %v2110 = vand.u32 %v2109, 4294901760
        %v2111 = vsub.f32 %v2109, %v2110
        %v2112 = vand.u32 %v2111, 4294901760
        %2113 = vmatmul.mubr.f32.gmra.mrb[0].mxu0 %v2112
        %v2114 = vpop.f32.mrb[0].mxu0
        %v2115 = vadd.f32 0.0, %v2114
        %v2116 = vpop.f32.mrb[0].mxu0
        %2117 = vmatprep.mubr.f32.mxu0 0.0
        %v2118 = vand.u32 %v1977, 4294901760
        %v2119 = vsub.f32 %v1977, %v2118
        %v2120 = vand.u32 %v2119, 4294901760
        %v2121 = vsub.f32 %v2119, %v2120
        %v2122 = vand.u32 %v2121, 4294901760
        %2123 = vmatmul.mubr.f32.gmra.mrb[0].mxu0 %v2122
        %v2124 = vpop.f32.mrb[0].mxu0
        %v2125 = vadd.f32 0.0, %v2124
        %v2126 = vpop.f32.mrb[0].mxu0
        %2127 = vmatprep.mubr.f32.mxu0 0.0
        %v2128 = vand.u32 %v1980, 4294901760
        %v2129 = vsub.f32 %v1980, %v2128
        %v2130 = vand.u32 %v2129, 4294901760
        %v2131 = vsub.f32 %v2129, %v2130
        %v2132 = vand.u32 %v2131, 4294901760
        %2133 = vmatmul.mubr.f32.gmra.mrb[0].mxu0 %v2132
        %v2134 = vpop.f32.mrb[0].mxu0
        %v2135 = vadd.f32 0.0, %v2134
        %v2136 = vpop.f32.mrb[0].mxu0
        %2137 = vmatprep.mubr.f32.mxu0 0.0
        %v2138 = vand.u32 %v1983, 4294901760
        %v2139 = vsub.f32 %v1983, %v2138
        %v2140 = vand.u32 %v2139, 4294901760
        %v2141 = vsub.f32 %v2139, %v2140
        %v2142 = vand.u32 %v2141, 4294901760
        %2143 = vmatmul.mubr.f32.gmra.mrb[0].mxu0 %v2142
        %v2144 = vpop.f32.mrb[0].mxu0
        %v2145 = vadd.f32 0.0, %v2144
        %v2146 = vpop.f32.mrb[0].mxu0
        %2147 = vmatprep.mubr.f32.mxu0 0.0
        %v2148 = vand.u32 %v1986, 4294901760
        %v2149 = vsub.f32 %v1986, %v2148
        %v2150 = vand.u32 %v2149, 4294901760
        %v2151 = vsub.f32 %v2149, %v2150
        %v2152 = vand.u32 %v2151, 4294901760
        %2153 = vmatmul.mubr.f32.gmra.mrb[0].mxu0 %v2152
        %v2154 = vpop.f32.mrb[0].mxu0
        %v2155 = vadd.f32 0.0, %v2154
        %v2156 = vpop.f32.mrb[0].mxu0
        %2157 = vmatprep.mubr.f32.mxu0 0.0
        %v2158 = vand.u32 %v1989, 4294901760
        %v2159 = vsub.f32 %v1989, %v2158
        %v2160 = vand.u32 %v2159, 4294901760
        %v2161 = vsub.f32 %v2159, %v2160
        %v2162 = vand.u32 %v2161, 4294901760
        %2163 = vmatmul.mubr.f32.gmra.mrb[0].mxu0 %v2162
        %v2164 = vpop.f32.mrb[0].mxu0
        %v2165 = vadd.f32 0.0, %v2164
        %v2166 = vpop.f32.mrb[0].mxu0
        %2167 = vmatprep.mubr.f32.mxu0 0.0
        %v2168 = vand.u32 %v1992, 4294901760
        %v2169 = vsub.f32 %v1992, %v2168
        %v2170 = vand.u32 %v2169, 4294901760
        %v2171 = vsub.f32 %v2169, %v2170
        %v2172 = vand.u32 %v2171, 4294901760
        %2173 = vmatmul.mubr.f32.gmra.mrb[0].mxu0 %v2172
        %v2174 = vpop.f32.mrb[0].mxu0
        %v2175 = vadd.f32 0.0, %v2174
        %v2176 = vpop.f32.mrb[0].mxu0
        %2177 = vmatprep.mubr.f32.mxu0 0.0
        %v2178 = vand.u32 %v1995, 4294901760
        %v2179 = vsub.f32 %v1995, %v2178
        %v2180 = vand.u32 %v2179, 4294901760
        %v2181 = vsub.f32 %v2179, %v2180
        %v2182 = vand.u32 %v2181, 4294901760
        %2183 = vmatmul.mubr.f32.gmra.mrb[0].mxu0 %v2182
        %v2184 = vpop.f32.mrb[0].mxu0
        %v2185 = vadd.f32 0.0, %v2184
        %v2186 = vpop.f32.mrb[0].mxu0
        %2187 = vmatprep.mubr.f32.mxu0 0.0
        %v2188 = vand.u32 %v1998, 4294901760
        %v2189 = vsub.f32 %v1998, %v2188
        %v2190 = vand.u32 %v2189, 4294901760
        %v2191 = vsub.f32 %v2189, %v2190
        %v2192 = vand.u32 %v2191, 4294901760
        %2193 = vmatmul.mubr.f32.gmra.mrb[0].mxu0 %v2192
        %v2194 = vpop.f32.mrb[0].mxu0
        %v2195 = vadd.f32 0.0, %v2194
        %v2196 = vpop.f32.mrb[0].mxu0
        %2197 = vmatprep.mubr.f32.mxu0 0.0
        %v2198 = vand.u32 %v2001, 4294901760
        %v2199 = vsub.f32 %v2001, %v2198
        %v2200 = vand.u32 %v2199, 4294901760
        %v2201 = vsub.f32 %v2199, %v2200
        %v2202 = vand.u32 %v2201, 4294901760
        %2203 = vmatmul.mubr.f32.gmra.mrb[0].mxu0 %v2202
        %v2204 = vpop.f32.mrb[0].mxu0
        %v2205 = vadd.f32 0.0, %v2204
        %v2206 = vpop.f32.mrb[0].mxu0
        %2207 = vmatprep.mubr.f32.mxu0 0.0
        %v2208 = vand.u32 %v2004, 4294901760
        %v2209 = vsub.f32 %v2004, %v2208
        %v2210 = vand.u32 %v2209, 4294901760
        %v2211 = vsub.f32 %v2209, %v2210
        %v2212 = vand.u32 %v2211, 4294901760
        %2213 = vmatmul.mubr.f32.gmra.mrb[0].mxu0 %v2212
        %v2214 = vpop.f32.mrb[0].mxu0
        %v2215 = vadd.f32 0.0, %v2214
        %v2216 = vpop.f32.mrb[0].mxu0
        %2217 = vmatprep.mubr.f32.mxu0 0.0
        %v2218 = vand.u32 %v2007, 4294901760
        %v2219 = vsub.f32 %v2007, %v2218
        %v2220 = vand.u32 %v2219, 4294901760
        %v2221 = vsub.f32 %v2219, %v2220
        %v2222 = vand.u32 %v2221, 4294901760
        %2223 = vmatmul.mubr.f32.gmra.mrb[0].mxu0 %v2222
        %v2224 = vpop.f32.mrb[0].mxu0
        %v2225 = vadd.f32 0.0, %v2224
        %v2226 = vpop.f32.mrb[0].mxu0
        %2227 = vmatprep.mubr.f32.mxu0 0.0
        %v2228 = vand.u32 %v2010, 4294901760
        %v2229 = vsub.f32 %v2010, %v2228
        %v2230 = vand.u32 %v2229, 4294901760
        %v2231 = vsub.f32 %v2229, %v2230
        %v2232 = vand.u32 %v2231, 4294901760
        %2233 = vmatmul.mubr.f32.gmra.mrb[0].mxu0 %v2232
        %v2234 = vpop.f32.mrb[0].mxu0
        %v2235 = vadd.f32 0.0, %v2234
        %v2236 = vpop.f32.mrb[0].mxu0
        %2237 = vmatprep.mubr.f32.mxu0 0.0
        %v2238 = vand.u32 %v2013, 4294901760
        %v2239 = vsub.f32 %v2013, %v2238
        %v2240 = vand.u32 %v2239, 4294901760
        %v2241 = vsub.f32 %v2239, %v2240
        %v2242 = vand.u32 %v2241, 4294901760
        %2243 = vmatmul.mubr.f32.gmra.mrb[0].mxu0 %v2242
        %v2244 = vpop.f32.mrb[0].mxu0
        %v2245 = vadd.f32 0.0, %v2244
        %v2246 = vpop.f32.mrb[0].mxu0
        %2247 = vdwg.mxu0
        %2248 = vmatprep.subr.mxu0 0.0
        %v2249 = vand.u32 %v1958, 4294901760
        %v2250 = vsub.f32 %v1958, %v2249
        %v2251 = vand.u32 %v2250, 4294901760
        %v2252 = vsub.f32 %v2250, %v2251
        %v2253 = vand.u32 %v2252, 4294901760
        %2254 = vmatpush1.msra.mxu0 %v2253
        %2255 = vmatprep.subr.mxu0 0.0
        %v2256 = vand.u32 %v1959, 4294901760
        %v2257 = vsub.f32 %v1959, %v2256
        %v2258 = vand.u32 %v2257, 4294901760
        %v2259 = vsub.f32 %v2257, %v2258
        %v2260 = vand.u32 %v2259, 4294901760
        %2261 = vmatpush1.msra.mxu0 %v2260
        %2262 = vmatprep.subr.mxu0 0.0
        %v2263 = vand.u32 %v1960, 4294901760
        %v2264 = vsub.f32 %v1960, %v2263
        %v2265 = vand.u32 %v2264, 4294901760
        %v2266 = vsub.f32 %v2264, %v2265
        %v2267 = vand.u32 %v2266, 4294901760
        %2268 = vmatpush1.msra.mxu0 %v2267
        %2269 = vmatprep.subr.mxu0 0.0
        %v2270 = vand.u32 %v1961, 4294901760
        %v2271 = vsub.f32 %v1961, %v2270
        %v2272 = vand.u32 %v2271, 4294901760
        %v2273 = vsub.f32 %v2271, %v2272
        %v2274 = vand.u32 %v2273, 4294901760
        %2275 = vmatpush1.msra.mxu0 %v2274
        %2276 = vmatprep.subr.mxu0 0.0
        %v2277 = vand.u32 %v1962, 4294901760
        %v2278 = vsub.f32 %v1962, %v2277
        %v2279 = vand.u32 %v2278, 4294901760
        %v2280 = vsub.f32 %v2278, %v2279
        %v2281 = vand.u32 %v2280, 4294901760
        %2282 = vmatpush1.msra.mxu0 %v2281
        %2283 = vmatprep.subr.mxu0 0.0
        %v2284 = vand.u32 %v1963, 4294901760
        %v2285 = vsub.f32 %v1963, %v2284
        %v2286 = vand.u32 %v2285, 4294901760
        %v2287 = vsub.f32 %v2285, %v2286
        %v2288 = vand.u32 %v2287, 4294901760
        %2289 = vmatpush1.msra.mxu0 %v2288
        %2290 = vmatprep.subr.mxu0 0.0
        %v2291 = vand.u32 %v1964, 4294901760
        %v2292 = vsub.f32 %v1964, %v2291
        %v2293 = vand.u32 %v2292, 4294901760
        %v2294 = vsub.f32 %v2292, %v2293
        %v2295 = vand.u32 %v2294, 4294901760
        %2296 = vmatpush1.msra.mxu0 %v2295
        %2297 = vmatprep.subr.mxu0 0.0
        %v2298 = vand.u32 %v1965, 4294901760
        %v2299 = vsub.f32 %v1965, %v2298
        %v2300 = vand.u32 %v2299, 4294901760
        %v2301 = vsub.f32 %v2299, %v2300
        %v2302 = vand.u32 %v2301, 4294901760
        %2303 = vmatpush1.msra.mxu0 %v2302
        %2304 = vmatprep.subr.mxu0 0.0
        %2305 = vmatpush1.msra.mxu0 0.0
        %2306 = vmatprep.subr.mxu0 0.0
        %2307 = vmatpush1.msra.mxu0 0.0
        %2308 = vmatprep.subr.mxu0 0.0
        %2309 = vmatpush1.msra.mxu0 0.0
        %2310 = vmatprep.subr.mxu0 0.0
        %2311 = vmatpush1.msra.mxu0 0.0
        %2312 = vmatprep.subr.mxu0 0.0
        %2313 = vmatpush1.msra.mxu0 0.0
        %2314 = vmatprep.subr.mxu0 0.0
        %2315 = vmatpush1.msra.mxu0 0.0
        %2316 = vmatprep.subr.mxu0 0.0
        %2317 = vmatpush1.msra.mxu0 0.0
        %2318 = vmatprep.subr.mxu0 0.0
        %2319 = vmatpush1.msra.mxu0 0.0
        %2320 = vmatprep.subr.mxu0 0.0
        %2321 = vmatpush1.msra.mxu0 0.0
        %2322 = vmatprep.subr.mxu0 0.0
        %2323 = vmatpush1.msra.mxu0 0.0
        %2324 = vmatprep.subr.mxu0 0.0
        %2325 = vmatpush1.msra.mxu0 0.0
        %2326 = vmatprep.subr.mxu0 0.0
        %2327 = vmatpush1.msra.mxu0 0.0
        %2328 = vmatprep.subr.mxu0 0.0
        %2329 = vmatpush1.msra.mxu0 0.0
        %2330 = vmatprep.subr.mxu0 0.0
        %2331 = vmatpush1.msra.mxu0 0.0
        %2332 = vmatprep.subr.mxu0 0.0
        %2333 = vmatpush1.msra.mxu0 0.0
        %2334 = vmatprep.subr.mxu0 0.0
        %2335 = vmatpush1.msra.mxu0 0.0
        %2336 = vmatprep.subr.mxu0 0.0
        %2337 = vmatpush1.msra.mxu0 0.0
        %2338 = vmatprep.subr.mxu0 0.0
        %2339 = vmatpush1.msra.mxu0 0.0
        %2340 = vmatprep.subr.mxu0 0.0
        %2341 = vmatpush1.msra.mxu0 0.0
        %2342 = vmatprep.subr.mxu0 0.0
        %2343 = vmatpush1.msra.mxu0 0.0
        %2344 = vmatprep.subr.mxu0 0.0
        %2345 = vmatpush1.msra.mxu0 0.0
        %2346 = vmatprep.subr.mxu0 0.0
        %2347 = vmatpush1.msra.mxu0 0.0
        %2348 = vmatprep.subr.mxu0 0.0
        %2349 = vmatpush1.msra.mxu0 0.0
        %2350 = vmatprep.subr.mxu0 0.0
        %2351 = vmatpush1.msra.mxu0 0.0
        %2352 = vmatprep.mubr.f32.mxu0 0.0
        %v2353 = vand.u32 %v1968, 4294901760
        %2354 = vmatmul.mubr.f32.gmra.mrb[0].mxu0 %v2353
        %v2355 = vpop.f32.mrb[0].mxu0
        %v2356 = vadd.f32 %v2095, %v2355
        %v2357 = vpop.f32.mrb[0].mxu0
        %2358 = vmatprep.mubr.f32.mxu0 0.0
        %v2359 = vand.u32 %v1971, 4294901760
        %2360 = vmatmul.mubr.f32.gmra.mrb[0].mxu0 %v2359
        %v2361 = vpop.f32.mrb[0].mxu0
        %v2362 = vadd.f32 %v2105, %v2361
        %v2363 = vpop.f32.mrb[0].mxu0
        %2364 = vmatprep.mubr.f32.mxu0 0.0
        %v2365 = vand.u32 %v1974, 4294901760
        %2366 = vmatmul.mubr.f32.gmra.mrb[0].mxu0 %v2365
        %v2367 = vpop.f32.mrb[0].mxu0
        %v2368 = vadd.f32 %v2115, %v2367
        %v2369 = vpop.f32.mrb[0].mxu0
        %2370 = vmatprep.mubr.f32.mxu0 0.0
        %v2371 = vand.u32 %v1977, 4294901760
        %2372 = vmatmul.mubr.f32.gmra.mrb[0].mxu0 %v2371
        %v2373 = vpop.f32.mrb[0].mxu0
        %v2374 = vadd.f32 %v2125, %v2373
        %v2375 = vpop.f32.mrb[0].mxu0
        %2376 = vmatprep.mubr.f32.mxu0 0.0
        %v2377 = vand.u32 %v1980, 4294901760
        %2378 = vmatmul.mubr.f32.gmra.mrb[0].mxu0 %v2377
        %v2379 = vpop.f32.mrb[0].mxu0
        %v2380 = vadd.f32 %v2135, %v2379
        %v2381 = vpop.f32.mrb[0].mxu0
        %2382 = vmatprep.mubr.f32.mxu0 0.0
        %v2383 = vand.u32 %v1983, 4294901760
        %2384 = vmatmul.mubr.f32.gmra.mrb[0].mxu0 %v2383
        %v2385 = vpop.f32.mrb[0].mxu0
        %v2386 = vadd.f32 %v2145, %v2385
        %v2387 = vpop.f32.mrb[0].mxu0
        %2388 = vmatprep.mubr.f32.mxu0 0.0
        %v2389 = vand.u32 %v1986, 4294901760
        %2390 = vmatmul.mubr.f32.gmra.mrb[0].mxu0 %v2389
        %v2391 = vpop.f32.mrb[0].mxu0
        %v2392 = vadd.f32 %v2155, %v2391
        %v2393 = vpop.f32.mrb[0].mxu0
        %2394 = vmatprep.mubr.f32.mxu0 0.0
        %v2395 = vand.u32 %v1989, 4294901760
        %2396 = vmatmul.mubr.f32.gmra.mrb[0].mxu0 %v2395
        %v2397 = vpop.f32.mrb[0].mxu0
        %v2398 = vadd.f32 %v2165, %v2397
        %v2399 = vpop.f32.mrb[0].mxu0
        %2400 = vmatprep.mubr.f32.mxu0 0.0
        %v2401 = vand.u32 %v1992, 4294901760
        %2402 = vmatmul.mubr.f32.gmra.mrb[0].mxu0 %v2401
        %v2403 = vpop.f32.mrb[0].mxu0
        %v2404 = vadd.f32 %v2175, %v2403
        %v2405 = vpop.f32.mrb[0].mxu0
        %2406 = vmatprep.mubr.f32.mxu0 0.0
        %v2407 = vand.u32 %v1995, 4294901760
        %2408 = vmatmul.mubr.f32.gmra.mrb[0].mxu0 %v2407
        %v2409 = vpop.f32.mrb[0].mxu0
        %v2410 = vadd.f32 %v2185, %v2409
        %v2411 = vpop.f32.mrb[0].mxu0
        %2412 = vmatprep.mubr.f32.mxu0 0.0
        %v2413 = vand.u32 %v1998, 4294901760
        %2414 = vmatmul.mubr.f32.gmra.mrb[0].mxu0 %v2413
        %v2415 = vpop.f32.mrb[0].mxu0
        %v2416 = vadd.f32 %v2195, %v2415
        %v2417 = vpop.f32.mrb[0].mxu0
        %2418 = vmatprep.mubr.f32.mxu0 0.0
        %v2419 = vand.u32 %v2001, 4294901760
        %2420 = vmatmul.mubr.f32.gmra.mrb[0].mxu0 %v2419
        %v2421 = vpop.f32.mrb[0].mxu0
        %v2422 = vadd.f32 %v2205, %v2421
        %v2423 = vpop.f32.mrb[0].mxu0
        %2424 = vmatprep.mubr.f32.mxu0 0.0
        %v2425 = vand.u32 %v2004, 4294901760
        %2426 = vmatmul.mubr.f32.gmra.mrb[0].mxu0 %v2425
        %v2427 = vpop.f32.mrb[0].mxu0
        %v2428 = vadd.f32 %v2215, %v2427
        %v2429 = vpop.f32.mrb[0].mxu0
        %2430 = vmatprep.mubr.f32.mxu0 0.0
        %v2431 = vand.u32 %v2007, 4294901760
        %2432 = vmatmul.mubr.f32.gmra.mrb[0].mxu0 %v2431
        %v2433 = vpop.f32.mrb[0].mxu0
        %v2434 = vadd.f32 %v2225, %v2433
        %v2435 = vpop.f32.mrb[0].mxu0
        %2436 = vmatprep.mubr.f32.mxu0 0.0
        %v2437 = vand.u32 %v2010, 4294901760
        %2438 = vmatmul.mubr.f32.gmra.mrb[0].mxu0 %v2437
        %v2439 = vpop.f32.mrb[0].mxu0
        %v2440 = vadd.f32 %v2235, %v2439
        %v2441 = vpop.f32.mrb[0].mxu0
        %2442 = vmatprep.mubr.f32.mxu0 0.0
        %v2443 = vand.u32 %v2013, 4294901760
        %2444 = vmatmul.mubr.f32.gmra.mrb[0].mxu0 %v2443
        %v2445 = vpop.f32.mrb[0].mxu0
        %v2446 = vadd.f32 %v2245, %v2445
        %v2447 = vpop.f32.mrb[0].mxu0
        %2448 = vdwg.mxu0
        %2449 = vmatprep.subr.mxu0 0.0
        %v2450 = vand.u32 %v1958, 4294901760
        %v2451 = vsub.f32 %v1958, %v2450
        %2452 = vmatpush1.msra.mxu0 %v2451
        %2453 = vmatprep.subr.mxu0 0.0
        %v2454 = vand.u32 %v1959, 4294901760
        %v2455 = vsub.f32 %v1959, %v2454
        %2456 = vmatpush1.msra.mxu0 %v2455
        %2457 = vmatprep.subr.mxu0 0.0
        %v2458 = vand.u32 %v1960, 4294901760
        %v2459 = vsub.f32 %v1960, %v2458
        %2460 = vmatpush1.msra.mxu0 %v2459
        %2461 = vmatprep.subr.mxu0 0.0
        %v2462 = vand.u32 %v1961, 4294901760
        %v2463 = vsub.f32 %v1961, %v2462
        %2464 = vmatpush1.msra.mxu0 %v2463
        %2465 = vmatprep.subr.mxu0 0.0
        %v2466 = vand.u32 %v1962, 4294901760
        %v2467 = vsub.f32 %v1962, %v2466
        %2468 = vmatpush1.msra.mxu0 %v2467
        %2469 = vmatprep.subr.mxu0 0.0
        %v2470 = vand.u32 %v1963, 4294901760
        %v2471 = vsub.f32 %v1963, %v2470
        %2472 = vmatpush1.msra.mxu0 %v2471
        %2473 = vmatprep.subr.mxu0 0.0
        %v2474 = vand.u32 %v1964, 4294901760
        %v2475 = vsub.f32 %v1964, %v2474
        %2476 = vmatpush1.msra.mxu0 %v2475
        %2477 = vmatprep.subr.mxu0 0.0
        %v2478 = vand.u32 %v1965, 4294901760
        %v2479 = vsub.f32 %v1965, %v2478
        %2480 = vmatpush1.msra.mxu0 %v2479
        %2481 = vmatprep.subr.mxu0 0.0
        %2482 = vmatpush1.msra.mxu0 0.0
        %2483 = vmatprep.subr.mxu0 0.0
        %2484 = vmatpush1.msra.mxu0 0.0
        %2485 = vmatprep.subr.mxu0 0.0
        %2486 = vmatpush1.msra.mxu0 0.0
        %2487 = vmatprep.subr.mxu0 0.0
        %2488 = vmatpush1.msra.mxu0 0.0
        %2489 = vmatprep.subr.mxu0 0.0
        %2490 = vmatpush1.msra.mxu0 0.0
        %2491 = vmatprep.subr.mxu0 0.0
        %2492 = vmatpush1.msra.mxu0 0.0
        %2493 = vmatprep.subr.mxu0 0.0
        %2494 = vmatpush1.msra.mxu0 0.0
        %2495 = vmatprep.subr.mxu0 0.0
        %2496 = vmatpush1.msra.mxu0 0.0
        %2497 = vmatprep.subr.mxu0 0.0
        %2498 = vmatpush1.msra.mxu0 0.0
        %2499 = vmatprep.subr.mxu0 0.0
        %2500 = vmatpush1.msra.mxu0 0.0
        %2501 = vmatprep.subr.mxu0 0.0
        %2502 = vmatpush1.msra.mxu0 0.0
        %2503 = vmatprep.subr.mxu0 0.0
        %2504 = vmatpush1.msra.mxu0 0.0
        %2505 = vmatprep.subr.mxu0 0.0
        %2506 = vmatpush1.msra.mxu0 0.0
        %2507 = vmatprep.subr.mxu0 0.0
        %2508 = vmatpush1.msra.mxu0 0.0
        %2509 = vmatprep.subr.mxu0 0.0
        %2510 = vmatpush1.msra.mxu0 0.0
        %2511 = vmatprep.subr.mxu0 0.0
        %2512 = vmatpush1.msra.mxu0 0.0
        %2513 = vmatprep.subr.mxu0 0.0
        %2514 = vmatpush1.msra.mxu0 0.0
        %2515 = vmatprep.subr.mxu0 0.0
        %2516 = vmatpush1.msra.mxu0 0.0
        %2517 = vmatprep.subr.mxu0 0.0
        %2518 = vmatpush1.msra.mxu0 0.0
        %2519 = vmatprep.subr.mxu0 0.0
        %2520 = vmatpush1.msra.mxu0 0.0
        %2521 = vmatprep.subr.mxu0 0.0
        %2522 = vmatpush1.msra.mxu0 0.0
        %2523 = vmatprep.subr.mxu0 0.0
        %2524 = vmatpush1.msra.mxu0 0.0
        %2525 = vmatprep.subr.mxu0 0.0
        %2526 = vmatpush1.msra.mxu0 0.0
        %2527 = vmatprep.subr.mxu0 0.0
        %2528 = vmatpush1.msra.mxu0 0.0
        %2529 = vmatprep.mubr.f32.mxu0 0.0
        %v2530 = vand.u32 %v1968, 4294901760
        %v2531 = vsub.f32 %v1968, %v2530
        %2532 = vmatmul.mubr.f32.gmra.mrb[0].mxu0 %v2531
        %v2533 = vpop.f32.mrb[0].mxu0
        %v2534 = vadd.f32 %v2356, %v2533
        %v2535 = vpop.f32.mrb[0].mxu0
        %2536 = vmatprep.mubr.f32.mxu0 0.0
        %v2537 = vand.u32 %v1971, 4294901760
        %v2538 = vsub.f32 %v1971, %v2537
        %2539 = vmatmul.mubr.f32.gmra.mrb[0].mxu0 %v2538
        %v2540 = vpop.f32.mrb[0].mxu0
        %v2541 = vadd.f32 %v2362, %v2540
        %v2542 = vpop.f32.mrb[0].mxu0
        %2543 = vmatprep.mubr.f32.mxu0 0.0
        %v2544 = vand.u32 %v1974, 4294901760
        %v2545 = vsub.f32 %v1974, %v2544
        %2546 = vmatmul.mubr.f32.gmra.mrb[0].mxu0 %v2545
        %v2547 = vpop.f32.mrb[0].mxu0
        %v2548 = vadd.f32 %v2368, %v2547
        %v2549 = vpop.f32.mrb[0].mxu0
        %2550 = vmatprep.mubr.f32.mxu0 0.0
        %v2551 = vand.u32 %v1977, 4294901760
        %v2552 = vsub.f32 %v1977, %v2551
        %2553 = vmatmul.mubr.f32.gmra.mrb[0].mxu0 %v2552
        %v2554 = vpop.f32.mrb[0].mxu0
        %v2555 = vadd.f32 %v2374, %v2554
        %v2556 = vpop.f32.mrb[0].mxu0
        %2557 = vmatprep.mubr.f32.mxu0 0.0
        %v2558 = vand.u32 %v1980, 4294901760
        %v2559 = vsub.f32 %v1980, %v2558
        %2560 = vmatmul.mubr.f32.gmra.mrb[0].mxu0 %v2559
        %v2561 = vpop.f32.mrb[0].mxu0
        %v2562 = vadd.f32 %v2380, %v2561
        %v2563 = vpop.f32.mrb[0].mxu0
        %2564 = vmatprep.mubr.f32.mxu0 0.0
        %v2565 = vand.u32 %v1983, 4294901760
        %v2566 = vsub.f32 %v1983, %v2565
        %2567 = vmatmul.mubr.f32.gmra.mrb[0].mxu0 %v2566
        %v2568 = vpop.f32.mrb[0].mxu0
        %v2569 = vadd.f32 %v2386, %v2568
        %v2570 = vpop.f32.mrb[0].mxu0
        %2571 = vmatprep.mubr.f32.mxu0 0.0
        %v2572 = vand.u32 %v1986, 4294901760
        %v2573 = vsub.f32 %v1986, %v2572
        %2574 = vmatmul.mubr.f32.gmra.mrb[0].mxu0 %v2573
        %v2575 = vpop.f32.mrb[0].mxu0
        %v2576 = vadd.f32 %v2392, %v2575
        %v2577 = vpop.f32.mrb[0].mxu0
        %2578 = vmatprep.mubr.f32.mxu0 0.0
        %v2579 = vand.u32 %v1989, 4294901760
        %v2580 = vsub.f32 %v1989, %v2579
        %2581 = vmatmul.mubr.f32.gmra.mrb[0].mxu0 %v2580
        %v2582 = vpop.f32.mrb[0].mxu0
        %v2583 = vadd.f32 %v2398, %v2582
        %v2584 = vpop.f32.mrb[0].mxu0
        %2585 = vmatprep.mubr.f32.mxu0 0.0
        %v2586 = vand.u32 %v1992, 4294901760
        %v2587 = vsub.f32 %v1992, %v2586
        %2588 = vmatmul.mubr.f32.gmra.mrb[0].mxu0 %v2587
        %v2589 = vpop.f32.mrb[0].mxu0
        %v2590 = vadd.f32 %v2404, %v2589
        %v2591 = vpop.f32.mrb[0].mxu0
        %2592 = vmatprep.mubr.f32.mxu0 0.0
        %v2593 = vand.u32 %v1995, 4294901760
        %v2594 = vsub.f32 %v1995, %v2593
        %2595 = vmatmul.mubr.f32.gmra.mrb[0].mxu0 %v2594
        %v2596 = vpop.f32.mrb[0].mxu0
        %v2597 = vadd.f32 %v2410, %v2596
        %v2598 = vpop.f32.mrb[0].mxu0
        %2599 = vmatprep.mubr.f32.mxu0 0.0
        %v2600 = vand.u32 %v1998, 4294901760
        %v2601 = vsub.f32 %v1998, %v2600
        %2602 = vmatmul.mubr.f32.gmra.mrb[0].mxu0 %v2601
        %v2603 = vpop.f32.mrb[0].mxu0
        %v2604 = vadd.f32 %v2416, %v2603
        %v2605 = vpop.f32.mrb[0].mxu0
        %2606 = vmatprep.mubr.f32.mxu0 0.0
        %v2607 = vand.u32 %v2001, 4294901760
        %v2608 = vsub.f32 %v2001, %v2607
        %2609 = vmatmul.mubr.f32.gmra.mrb[0].mxu0 %v2608
        %v2610 = vpop.f32.mrb[0].mxu0
        %v2611 = vadd.f32 %v2422, %v2610
        %v2612 = vpop.f32.mrb[0].mxu0
        %2613 = vmatprep.mubr.f32.mxu0 0.0
        %v2614 = vand.u32 %v2004, 4294901760
        %v2615 = vsub.f32 %v2004, %v2614
        %2616 = vmatmul.mubr.f32.gmra.mrb[0].mxu0 %v2615
        %v2617 = vpop.f32.mrb[0].mxu0
        %v2618 = vadd.f32 %v2428, %v2617
        %v2619 = vpop.f32.mrb[0].mxu0
        %2620 = vmatprep.mubr.f32.mxu0 0.0
        %v2621 = vand.u32 %v2007, 4294901760
        %v2622 = vsub.f32 %v2007, %v2621
        %2623 = vmatmul.mubr.f32.gmra.mrb[0].mxu0 %v2622
        %v2624 = vpop.f32.mrb[0].mxu0
        %v2625 = vadd.f32 %v2434, %v2624
        %v2626 = vpop.f32.mrb[0].mxu0
        %2627 = vmatprep.mubr.f32.mxu0 0.0
        %v2628 = vand.u32 %v2010, 4294901760
        %v2629 = vsub.f32 %v2010, %v2628
        %2630 = vmatmul.mubr.f32.gmra.mrb[0].mxu0 %v2629
        %v2631 = vpop.f32.mrb[0].mxu0
        %v2632 = vadd.f32 %v2440, %v2631
        %v2633 = vpop.f32.mrb[0].mxu0
        %2634 = vmatprep.mubr.f32.mxu0 0.0
        %v2635 = vand.u32 %v2013, 4294901760
        %v2636 = vsub.f32 %v2013, %v2635
        %2637 = vmatmul.mubr.f32.gmra.mrb[0].mxu0 %v2636
        %v2638 = vpop.f32.mrb[0].mxu0
        %v2639 = vadd.f32 %v2446, %v2638
        %v2640 = vpop.f32.mrb[0].mxu0
        %2641 = vdwg.mxu0
        %2642 = vmatprep.subr.mxu0 0.0
        %v2643 = vand.u32 %v1958, 4294901760
        %2644 = vmatpush1.msra.mxu0 %v2643
        %2645 = vmatprep.subr.mxu0 0.0
        %v2646 = vand.u32 %v1959, 4294901760
        %2647 = vmatpush1.msra.mxu0 %v2646
        %2648 = vmatprep.subr.mxu0 0.0
        %v2649 = vand.u32 %v1960, 4294901760
        %2650 = vmatpush1.msra.mxu0 %v2649
        %2651 = vmatprep.subr.mxu0 0.0
        %v2652 = vand.u32 %v1961, 4294901760
        %2653 = vmatpush1.msra.mxu0 %v2652
        %2654 = vmatprep.subr.mxu0 0.0
        %v2655 = vand.u32 %v1962, 4294901760
        %2656 = vmatpush1.msra.mxu0 %v2655
        %2657 = vmatprep.subr.mxu0 0.0
        %v2658 = vand.u32 %v1963, 4294901760
        %2659 = vmatpush1.msra.mxu0 %v2658
        %2660 = vmatprep.subr.mxu0 0.0
        %v2661 = vand.u32 %v1964, 4294901760
        %2662 = vmatpush1.msra.mxu0 %v2661
        %2663 = vmatprep.subr.mxu0 0.0
        %v2664 = vand.u32 %v1965, 4294901760
        %2665 = vmatpush1.msra.mxu0 %v2664
        %2666 = vmatprep.subr.mxu0 0.0
        %2667 = vmatpush1.msra.mxu0 0.0
        %2668 = vmatprep.subr.mxu0 0.0
        %2669 = vmatpush1.msra.mxu0 0.0
        %2670 = vmatprep.subr.mxu0 0.0
        %2671 = vmatpush1.msra.mxu0 0.0
        %2672 = vmatprep.subr.mxu0 0.0
        %2673 = vmatpush1.msra.mxu0 0.0
        %2674 = vmatprep.subr.mxu0 0.0
        %2675 = vmatpush1.msra.mxu0 0.0
        %2676 = vmatprep.subr.mxu0 0.0
        %2677 = vmatpush1.msra.mxu0 0.0
        %2678 = vmatprep.subr.mxu0 0.0
        %2679 = vmatpush1.msra.mxu0 0.0
        %2680 = vmatprep.subr.mxu0 0.0
        %2681 = vmatpush1.msra.mxu0 0.0
        %2682 = vmatprep.subr.mxu0 0.0
        %2683 = vmatpush1.msra.mxu0 0.0
        %2684 = vmatprep.subr.mxu0 0.0
        %2685 = vmatpush1.msra.mxu0 0.0
        %2686 = vmatprep.subr.mxu0 0.0
        %2687 = vmatpush1.msra.mxu0 0.0
        %2688 = vmatprep.subr.mxu0 0.0
        %2689 = vmatpush1.msra.mxu0 0.0
        %2690 = vmatprep.subr.mxu0 0.0
        %2691 = vmatpush1.msra.mxu0 0.0
        %2692 = vmatprep.subr.mxu0 0.0
        %2693 = vmatpush1.msra.mxu0 0.0
        %2694 = vmatprep.subr.mxu0 0.0
        %2695 = vmatpush1.msra.mxu0 0.0
        %2696 = vmatprep.subr.mxu0 0.0
        %2697 = vmatpush1.msra.mxu0 0.0
        %2698 = vmatprep.subr.mxu0 0.0
        %2699 = vmatpush1.msra.mxu0 0.0
        %2700 = vmatprep.subr.mxu0 0.0
        %2701 = vmatpush1.msra.mxu0 0.0
        %2702 = vmatprep.subr.mxu0 0.0
        %2703 = vmatpush1.msra.mxu0 0.0
        %2704 = vmatprep.subr.mxu0 0.0
        %2705 = vmatpush1.msra.mxu0 0.0
        %2706 = vmatprep.subr.mxu0 0.0
        %2707 = vmatpush1.msra.mxu0 0.0
        %2708 = vmatprep.subr.mxu0 0.0
        %2709 = vmatpush1.msra.mxu0 0.0
        %2710 = vmatprep.subr.mxu0 0.0
        %2711 = vmatpush1.msra.mxu0 0.0
        %2712 = vmatprep.subr.mxu0 0.0
        %2713 = vmatpush1.msra.mxu0 0.0
        %2714 = vmatprep.mubr.f32.mxu0 0.0
        %v2715 = vand.u32 %v1968, 4294901760
        %v2716 = vsub.f32 %v1968, %v2715
        %v2717 = vand.u32 %v2716, 4294901760
        %2718 = vmatmul.mubr.f32.gmra.mrb[0].mxu0 %v2717
        %v2719 = vpop.f32.mrb[0].mxu0
        %v2720 = vadd.f32 %v2534, %v2719
        %v2721 = vpop.f32.mrb[0].mxu0
        %2722 = vmatprep.mubr.f32.mxu0 0.0
        %v2723 = vand.u32 %v1971, 4294901760
        %v2724 = vsub.f32 %v1971, %v2723
        %v2725 = vand.u32 %v2724, 4294901760
        %2726 = vmatmul.mubr.f32.gmra.mrb[0].mxu0 %v2725
        %v2727 = vpop.f32.mrb[0].mxu0
        %v2728 = vadd.f32 %v2541, %v2727
        %v2729 = vpop.f32.mrb[0].mxu0
        %2730 = vmatprep.mubr.f32.mxu0 0.0
        %v2731 = vand.u32 %v1974, 4294901760
        %v2732 = vsub.f32 %v1974, %v2731
        %v2733 = vand.u32 %v2732, 4294901760
        %2734 = vmatmul.mubr.f32.gmra.mrb[0].mxu0 %v2733
        %v2735 = vpop.f32.mrb[0].mxu0
        %v2736 = vadd.f32 %v2548, %v2735
        %v2737 = vpop.f32.mrb[0].mxu0
        %2738 = vmatprep.mubr.f32.mxu0 0.0
        %v2739 = vand.u32 %v1977, 4294901760
        %v2740 = vsub.f32 %v1977, %v2739
        %v2741 = vand.u32 %v2740, 4294901760
        %2742 = vmatmul.mubr.f32.gmra.mrb[0].mxu0 %v2741
        %v2743 = vpop.f32.mrb[0].mxu0
        %v2744 = vadd.f32 %v2555, %v2743
        %v2745 = vpop.f32.mrb[0].mxu0
        %2746 = vmatprep.mubr.f32.mxu0 0.0
        %v2747 = vand.u32 %v1980, 4294901760
        %v2748 = vsub.f32 %v1980, %v2747
        %v2749 = vand.u32 %v2748, 4294901760
        %2750 = vmatmul.mubr.f32.gmra.mrb[0].mxu0 %v2749
        %v2751 = vpop.f32.mrb[0].mxu0
        %v2752 = vadd.f32 %v2562, %v2751
        %v2753 = vpop.f32.mrb[0].mxu0
        %2754 = vmatprep.mubr.f32.mxu0 0.0
        %v2755 = vand.u32 %v1983, 4294901760
        %v2756 = vsub.f32 %v1983, %v2755
        %v2757 = vand.u32 %v2756, 4294901760
        %2758 = vmatmul.mubr.f32.gmra.mrb[0].mxu0 %v2757
        %v2759 = vpop.f32.mrb[0].mxu0
        %v2760 = vadd.f32 %v2569, %v2759
        %v2761 = vpop.f32.mrb[0].mxu0
        %2762 = vmatprep.mubr.f32.mxu0 0.0
        %v2763 = vand.u32 %v1986, 4294901760
        %v2764 = vsub.f32 %v1986, %v2763
        %v2765 = vand.u32 %v2764, 4294901760
        %2766 = vmatmul.mubr.f32.gmra.mrb[0].mxu0 %v2765
        %v2767 = vpop.f32.mrb[0].mxu0
        %v2768 = vadd.f32 %v2576, %v2767
        %v2769 = vpop.f32.mrb[0].mxu0
        %2770 = vmatprep.mubr.f32.mxu0 0.0
        %v2771 = vand.u32 %v1989, 4294901760
        %v2772 = vsub.f32 %v1989, %v2771
        %v2773 = vand.u32 %v2772, 4294901760
        %2774 = vmatmul.mubr.f32.gmra.mrb[0].mxu0 %v2773
        %v2775 = vpop.f32.mrb[0].mxu0
        %v2776 = vadd.f32 %v2583, %v2775
        %v2777 = vpop.f32.mrb[0].mxu0
        %2778 = vmatprep.mubr.f32.mxu0 0.0
        %v2779 = vand.u32 %v1992, 4294901760
        %v2780 = vsub.f32 %v1992, %v2779
        %v2781 = vand.u32 %v2780, 4294901760
        %2782 = vmatmul.mubr.f32.gmra.mrb[0].mxu0 %v2781
        %v2783 = vpop.f32.mrb[0].mxu0
        %v2784 = vadd.f32 %v2590, %v2783
        %v2785 = vpop.f32.mrb[0].mxu0
        %2786 = vmatprep.mubr.f32.mxu0 0.0
        %v2787 = vand.u32 %v1995, 4294901760
        %v2788 = vsub.f32 %v1995, %v2787
        %v2789 = vand.u32 %v2788, 4294901760
        %2790 = vmatmul.mubr.f32.gmra.mrb[0].mxu0 %v2789
        %v2791 = vpop.f32.mrb[0].mxu0
        %v2792 = vadd.f32 %v2597, %v2791
        %v2793 = vpop.f32.mrb[0].mxu0
        %2794 = vmatprep.mubr.f32.mxu0 0.0
        %v2795 = vand.u32 %v1998, 4294901760
        %v2796 = vsub.f32 %v1998, %v2795
        %v2797 = vand.u32 %v2796, 4294901760
        %2798 = vmatmul.mubr.f32.gmra.mrb[0].mxu0 %v2797
        %v2799 = vpop.f32.mrb[0].mxu0
        %v2800 = vadd.f32 %v2604, %v2799
        %v2801 = vpop.f32.mrb[0].mxu0
        %2802 = vmatprep.mubr.f32.mxu0 0.0
        %v2803 = vand.u32 %v2001, 4294901760
        %v2804 = vsub.f32 %v2001, %v2803
        %v2805 = vand.u32 %v2804, 4294901760
        %2806 = vmatmul.mubr.f32.gmra.mrb[0].mxu0 %v2805
        %v2807 = vpop.f32.mrb[0].mxu0
        %v2808 = vadd.f32 %v2611, %v2807
        %v2809 = vpop.f32.mrb[0].mxu0
        %2810 = vmatprep.mubr.f32.mxu0 0.0
        %v2811 = vand.u32 %v2004, 4294901760
        %v2812 = vsub.f32 %v2004, %v2811
        %v2813 = vand.u32 %v2812, 4294901760
        %2814 = vmatmul.mubr.f32.gmra.mrb[0].mxu0 %v2813
        %v2815 = vpop.f32.mrb[0].mxu0
        %v2816 = vadd.f32 %v2618, %v2815
        %v2817 = vpop.f32.mrb[0].mxu0
        %2818 = vmatprep.mubr.f32.mxu0 0.0
        %v2819 = vand.u32 %v2007, 4294901760
        %v2820 = vsub.f32 %v2007, %v2819
        %v2821 = vand.u32 %v2820, 4294901760
        %2822 = vmatmul.mubr.f32.gmra.mrb[0].mxu0 %v2821
        %v2823 = vpop.f32.mrb[0].mxu0
        %v2824 = vadd.f32 %v2625, %v2823
        %v2825 = vpop.f32.mrb[0].mxu0
        %2826 = vmatprep.mubr.f32.mxu0 0.0
        %v2827 = vand.u32 %v2010, 4294901760
        %v2828 = vsub.f32 %v2010, %v2827
        %v2829 = vand.u32 %v2828, 4294901760
        %2830 = vmatmul.mubr.f32.gmra.mrb[0].mxu0 %v2829
        %v2831 = vpop.f32.mrb[0].mxu0
        %v2832 = vadd.f32 %v2632, %v2831
        %v2833 = vpop.f32.mrb[0].mxu0
        %2834 = vmatprep.mubr.f32.mxu0 0.0
        %v2835 = vand.u32 %v2013, 4294901760
        %v2836 = vsub.f32 %v2013, %v2835
        %v2837 = vand.u32 %v2836, 4294901760
        %2838 = vmatmul.mubr.f32.gmra.mrb[0].mxu0 %v2837
        %v2839 = vpop.f32.mrb[0].mxu0
        %v2840 = vadd.f32 %v2639, %v2839
        %v2841 = vpop.f32.mrb[0].mxu0
        %2842 = vdwg.mxu0
        %2843 = vmatprep.subr.mxu0 0.0
        %v2844 = vand.u32 %v1958, 4294901760
        %v2845 = vsub.f32 %v1958, %v2844
        %v2846 = vand.u32 %v2845, 4294901760
        %2847 = vmatpush1.msra.mxu0 %v2846
        %2848 = vmatprep.subr.mxu0 0.0
        %v2849 = vand.u32 %v1959, 4294901760
        %v2850 = vsub.f32 %v1959, %v2849
        %v2851 = vand.u32 %v2850, 4294901760
        %2852 = vmatpush1.msra.mxu0 %v2851
        %2853 = vmatprep.subr.mxu0 0.0
        %v2854 = vand.u32 %v1960, 4294901760
        %v2855 = vsub.f32 %v1960, %v2854
        %v2856 = vand.u32 %v2855, 4294901760
        %2857 = vmatpush1.msra.mxu0 %v2856
        %2858 = vmatprep.subr.mxu0 0.0
        %v2859 = vand.u32 %v1961, 4294901760
        %v2860 = vsub.f32 %v1961, %v2859
        %v2861 = vand.u32 %v2860, 4294901760
        %2862 = vmatpush1.msra.mxu0 %v2861
        %2863 = vmatprep.subr.mxu0 0.0
        %v2864 = vand.u32 %v1962, 4294901760
        %v2865 = vsub.f32 %v1962, %v2864
        %v2866 = vand.u32 %v2865, 4294901760
        %2867 = vmatpush1.msra.mxu0 %v2866
        %2868 = vmatprep.subr.mxu0 0.0
        %v2869 = vand.u32 %v1963, 4294901760
        %v2870 = vsub.f32 %v1963, %v2869
        %v2871 = vand.u32 %v2870, 4294901760
        %2872 = vmatpush1.msra.mxu0 %v2871
        %2873 = vmatprep.subr.mxu0 0.0
        %v2874 = vand.u32 %v1964, 4294901760
        %v2875 = vsub.f32 %v1964, %v2874
        %v2876 = vand.u32 %v2875, 4294901760
        %2877 = vmatpush1.msra.mxu0 %v2876
        %2878 = vmatprep.subr.mxu0 0.0
        %v2879 = vand.u32 %v1965, 4294901760
        %v2880 = vsub.f32 %v1965, %v2879
        %v2881 = vand.u32 %v2880, 4294901760
        %2882 = vmatpush1.msra.mxu0 %v2881
        %2883 = vmatprep.subr.mxu0 0.0
        %2884 = vmatpush1.msra.mxu0 0.0
        %2885 = vmatprep.subr.mxu0 0.0
        %2886 = vmatpush1.msra.mxu0 0.0
        %2887 = vmatprep.subr.mxu0 0.0
        %2888 = vmatpush1.msra.mxu0 0.0
        %2889 = vmatprep.subr.mxu0 0.0
        %2890 = vmatpush1.msra.mxu0 0.0
        %2891 = vmatprep.subr.mxu0 0.0
        %2892 = vmatpush1.msra.mxu0 0.0
        %2893 = vmatprep.subr.mxu0 0.0
        %2894 = vmatpush1.msra.mxu0 0.0
        %2895 = vmatprep.subr.mxu0 0.0
        %2896 = vmatpush1.msra.mxu0 0.0
        %2897 = vmatprep.subr.mxu0 0.0
        %2898 = vmatpush1.msra.mxu0 0.0
        %2899 = vmatprep.subr.mxu0 0.0
        %2900 = vmatpush1.msra.mxu0 0.0
        %2901 = vmatprep.subr.mxu0 0.0
        %2902 = vmatpush1.msra.mxu0 0.0
        %2903 = vmatprep.subr.mxu0 0.0
        %2904 = vmatpush1.msra.mxu0 0.0
        %2905 = vmatprep.subr.mxu0 0.0
        %2906 = vmatpush1.msra.mxu0 0.0
        %2907 = vmatprep.subr.mxu0 0.0
        %2908 = vmatpush1.msra.mxu0 0.0
        %2909 = vmatprep.subr.mxu0 0.0
        %2910 = vmatpush1.msra.mxu0 0.0
        %2911 = vmatprep.subr.mxu0 0.0
        %2912 = vmatpush1.msra.mxu0 0.0
        %2913 = vmatprep.subr.mxu0 0.0
        %2914 = vmatpush1.msra.mxu0 0.0
        %2915 = vmatprep.subr.mxu0 0.0
        %2916 = vmatpush1.msra.mxu0 0.0
        %2917 = vmatprep.subr.mxu0 0.0
        %2918 = vmatpush1.msra.mxu0 0.0
        %2919 = vmatprep.subr.mxu0 0.0
        %2920 = vmatpush1.msra.mxu0 0.0
        %2921 = vmatprep.subr.mxu0 0.0
        %2922 = vmatpush1.msra.mxu0 0.0
        %2923 = vmatprep.subr.mxu0 0.0
        %2924 = vmatpush1.msra.mxu0 0.0
        %2925 = vmatprep.subr.mxu0 0.0
        %2926 = vmatpush1.msra.mxu0 0.0
        %2927 = vmatprep.subr.mxu0 0.0
        %2928 = vmatpush1.msra.mxu0 0.0
        %2929 = vmatprep.subr.mxu0 0.0
        %2930 = vmatpush1.msra.mxu0 0.0
        %2931 = vmatprep.mubr.f32.mxu0 0.0
        %v2932 = vand.u32 %v1968, 4294901760
        %2933 = vmatmul.mubr.f32.gmra.mrb[0].mxu0 %v2932
        %v2934 = vpop.f32.mrb[0].mxu0
        %v2935 = vadd.f32 %v2720, %v2934
        %v2936 = vpop.f32.mrb[0].mxu0
        %2937 = vmatprep.mubr.f32.mxu0 0.0
        %v2938 = vand.u32 %v1971, 4294901760
        %2939 = vmatmul.mubr.f32.gmra.mrb[0].mxu0 %v2938
        %v2940 = vpop.f32.mrb[0].mxu0
        %v2941 = vadd.f32 %v2728, %v2940
        %v2942 = vpop.f32.mrb[0].mxu0
        %2943 = vmatprep.mubr.f32.mxu0 0.0
        %v2944 = vand.u32 %v1974, 4294901760
        %2945 = vmatmul.mubr.f32.gmra.mrb[0].mxu0 %v2944
        %v2946 = vpop.f32.mrb[0].mxu0
        %v2947 = vadd.f32 %v2736, %v2946
        %v2948 = vpop.f32.mrb[0].mxu0
        %2949 = vmatprep.mubr.f32.mxu0 0.0
        %v2950 = vand.u32 %v1977, 4294901760
        %2951 = vmatmul.mubr.f32.gmra.mrb[0].mxu0 %v2950
        %v2952 = vpop.f32.mrb[0].mxu0
        %v2953 = vadd.f32 %v2744, %v2952
        %v2954 = vpop.f32.mrb[0].mxu0
        %2955 = vmatprep.mubr.f32.mxu0 0.0
        %v2956 = vand.u32 %v1980, 4294901760
        %2957 = vmatmul.mubr.f32.gmra.mrb[0].mxu0 %v2956
        %v2958 = vpop.f32.mrb[0].mxu0
        %v2959 = vadd.f32 %v2752, %v2958
        %v2960 = vpop.f32.mrb[0].mxu0
        %2961 = vmatprep.mubr.f32.mxu0 0.0
        %v2962 = vand.u32 %v1983, 4294901760
        %2963 = vmatmul.mubr.f32.gmra.mrb[0].mxu0 %v2962
        %v2964 = vpop.f32.mrb[0].mxu0
        %v2965 = vadd.f32 %v2760, %v2964
        %v2966 = vpop.f32.mrb[0].mxu0
        %2967 = vmatprep.mubr.f32.mxu0 0.0
        %v2968 = vand.u32 %v1986, 4294901760
        %2969 = vmatmul.mubr.f32.gmra.mrb[0].mxu0 %v2968
        %v2970 = vpop.f32.mrb[0].mxu0
        %v2971 = vadd.f32 %v2768, %v2970
        %v2972 = vpop.f32.mrb[0].mxu0
        %2973 = vmatprep.mubr.f32.mxu0 0.0
        %v2974 = vand.u32 %v1989, 4294901760
        %2975 = vmatmul.mubr.f32.gmra.mrb[0].mxu0 %v2974
        %v2976 = vpop.f32.mrb[0].mxu0
        %v2977 = vadd.f32 %v2776, %v2976
        %v2978 = vpop.f32.mrb[0].mxu0
        %2979 = vmatprep.mubr.f32.mxu0 0.0
        %v2980 = vand.u32 %v1992, 4294901760
        %2981 = vmatmul.mubr.f32.gmra.mrb[0].mxu0 %v2980
        %v2982 = vpop.f32.mrb[0].mxu0
        %v2983 = vadd.f32 %v2784, %v2982
        %v2984 = vpop.f32.mrb[0].mxu0
        %2985 = vmatprep.mubr.f32.mxu0 0.0
        %v2986 = vand.u32 %v1995, 4294901760
        %2987 = vmatmul.mubr.f32.gmra.mrb[0].mxu0 %v2986
        %v2988 = vpop.f32.mrb[0].mxu0
        %v2989 = vadd.f32 %v2792, %v2988
        %v2990 = vpop.f32.mrb[0].mxu0
        %2991 = vmatprep.mubr.f32.mxu0 0.0
        %v2992 = vand.u32 %v1998, 4294901760
        %2993 = vmatmul.mubr.f32.gmra.mrb[0].mxu0 %v2992
        %v2994 = vpop.f32.mrb[0].mxu0
        %v2995 = vadd.f32 %v2800, %v2994
        %v2996 = vpop.f32.mrb[0].mxu0
        %2997 = vmatprep.mubr.f32.mxu0 0.0
        %v2998 = vand.u32 %v2001, 4294901760
        %2999 = vmatmul.mubr.f32.gmra.mrb[0].mxu0 %v2998
        %v3000 = vpop.f32.mrb[0].mxu0
        %v3001 = vadd.f32 %v2808, %v3000
        %v3002 = vpop.f32.mrb[0].mxu0
        %3003 = vmatprep.mubr.f32.mxu0 0.0
        %v3004 = vand.u32 %v2004, 4294901760
        %3005 = vmatmul.mubr.f32.gmra.mrb[0].mxu0 %v3004
        %v3006 = vpop.f32.mrb[0].mxu0
        %v3007 = vadd.f32 %v2816, %v3006
        %v3008 = vpop.f32.mrb[0].mxu0
        %3009 = vmatprep.mubr.f32.mxu0 0.0
        %v3010 = vand.u32 %v2007, 4294901760
        %3011 = vmatmul.mubr.f32.gmra.mrb[0].mxu0 %v3010
        %v3012 = vpop.f32.mrb[0].mxu0
        %v3013 = vadd.f32 %v2824, %v3012
        %v3014 = vpop.f32.mrb[0].mxu0
        %3015 = vmatprep.mubr.f32.mxu0 0.0
        %v3016 = vand.u32 %v2010, 4294901760
        %3017 = vmatmul.mubr.f32.gmra.mrb[0].mxu0 %v3016
        %v3018 = vpop.f32.mrb[0].mxu0
        %v3019 = vadd.f32 %v2832, %v3018
        %v3020 = vpop.f32.mrb[0].mxu0
        %3021 = vmatprep.mubr.f32.mxu0 0.0
        %v3022 = vand.u32 %v2013, 4294901760
        %3023 = vmatmul.mubr.f32.gmra.mrb[0].mxu0 %v3022
        %v3024 = vpop.f32.mrb[0].mxu0
        %v3025 = vadd.f32 %v2840, %v3024
        %v3026 = vpop.f32.mrb[0].mxu0
        %3027 = vdwg.mxu0
        %3028 = vmatprep.subr.mxu0 0.0
        %v3029 = vand.u32 %v1958, 4294901760
        %3030 = vmatpush1.msra.mxu0 %v3029
        %3031 = vmatprep.subr.mxu0 0.0
        %v3032 = vand.u32 %v1959, 4294901760
        %3033 = vmatpush1.msra.mxu0 %v3032
        %3034 = vmatprep.subr.mxu0 0.0
        %v3035 = vand.u32 %v1960, 4294901760
        %3036 = vmatpush1.msra.mxu0 %v3035
        %3037 = vmatprep.subr.mxu0 0.0
        %v3038 = vand.u32 %v1961, 4294901760
        %3039 = vmatpush1.msra.mxu0 %v3038
        %3040 = vmatprep.subr.mxu0 0.0
        %v3041 = vand.u32 %v1962, 4294901760
        %3042 = vmatpush1.msra.mxu0 %v3041
        %3043 = vmatprep.subr.mxu0 0.0
        %v3044 = vand.u32 %v1963, 4294901760
        %3045 = vmatpush1.msra.mxu0 %v3044
        %3046 = vmatprep.subr.mxu0 0.0
        %v3047 = vand.u32 %v1964, 4294901760
        %3048 = vmatpush1.msra.mxu0 %v3047
        %3049 = vmatprep.subr.mxu0 0.0
        %v3050 = vand.u32 %v1965, 4294901760
        %3051 = vmatpush1.msra.mxu0 %v3050
        %3052 = vmatprep.subr.mxu0 0.0
        %3053 = vmatpush1.msra.mxu0 0.0
        %3054 = vmatprep.subr.mxu0 0.0
        %3055 = vmatpush1.msra.mxu0 0.0
        %3056 = vmatprep.subr.mxu0 0.0
        %3057 = vmatpush1.msra.mxu0 0.0
        %3058 = vmatprep.subr.mxu0 0.0
        %3059 = vmatpush1.msra.mxu0 0.0
        %3060 = vmatprep.subr.mxu0 0.0
        %3061 = vmatpush1.msra.mxu0 0.0
        %3062 = vmatprep.subr.mxu0 0.0
        %3063 = vmatpush1.msra.mxu0 0.0
        %3064 = vmatprep.subr.mxu0 0.0
        %3065 = vmatpush1.msra.mxu0 0.0
        %3066 = vmatprep.subr.mxu0 0.0
        %3067 = vmatpush1.msra.mxu0 0.0
        %3068 = vmatprep.subr.mxu0 0.0
        %3069 = vmatpush1.msra.mxu0 0.0
        %3070 = vmatprep.subr.mxu0 0.0
        %3071 = vmatpush1.msra.mxu0 0.0
        %3072 = vmatprep.subr.mxu0 0.0
        %3073 = vmatpush1.msra.mxu0 0.0
        %3074 = vmatprep.subr.mxu0 0.0
        %3075 = vmatpush1.msra.mxu0 0.0
        %3076 = vmatprep.subr.mxu0 0.0
        %3077 = vmatpush1.msra.mxu0 0.0
        %3078 = vmatprep.subr.mxu0 0.0
        %3079 = vmatpush1.msra.mxu0 0.0
        %3080 = vmatprep.subr.mxu0 0.0
        %3081 = vmatpush1.msra.mxu0 0.0
        %3082 = vmatprep.subr.mxu0 0.0
        %3083 = vmatpush1.msra.mxu0 0.0
        %3084 = vmatprep.subr.mxu0 0.0
        %3085 = vmatpush1.msra.mxu0 0.0
        %3086 = vmatprep.subr.mxu0 0.0
        %3087 = vmatpush1.msra.mxu0 0.0
        %3088 = vmatprep.subr.mxu0 0.0
        %3089 = vmatpush1.msra.mxu0 0.0
        %3090 = vmatprep.subr.mxu0 0.0
        %3091 = vmatpush1.msra.mxu0 0.0
        %3092 = vmatprep.subr.mxu0 0.0
        %3093 = vmatpush1.msra.mxu0 0.0
        %3094 = vmatprep.subr.mxu0 0.0
        %3095 = vmatpush1.msra.mxu0 0.0
        %3096 = vmatprep.subr.mxu0 0.0
        %3097 = vmatpush1.msra.mxu0 0.0
        %3098 = vmatprep.subr.mxu0 0.0
        %3099 = vmatpush1.msra.mxu0 0.0
        %3100 = vmatprep.mubr.f32.mxu0 0.0
        %v3101 = vand.u32 %v1968, 4294901760
        %3102 = vmatmul.mubr.f32.gmra.mrb[0].mxu0 %v3101
        %v3103 = vpop.f32.mrb[0].mxu0
        %v3104 = vadd.f32 %v2935, %v3103
        %v3105 = vpop.f32.mrb[0].mxu0
        %3106 = vmatprep.mubr.f32.mxu0 0.0
        %v3107 = vand.u32 %v1971, 4294901760
        %3108 = vmatmul.mubr.f32.gmra.mrb[0].mxu0 %v3107
        %v3109 = vpop.f32.mrb[0].mxu0
        %v3110 = vadd.f32 %v2941, %v3109
        %v3111 = vpop.f32.mrb[0].mxu0
        %3112 = vmatprep.mubr.f32.mxu0 0.0
        %v3113 = vand.u32 %v1974, 4294901760
        %3114 = vmatmul.mubr.f32.gmra.mrb[0].mxu0 %v3113
        %v3115 = vpop.f32.mrb[0].mxu0
        %v3116 = vadd.f32 %v2947, %v3115
        %v3117 = vpop.f32.mrb[0].mxu0
        %3118 = vmatprep.mubr.f32.mxu0 0.0
        %v3119 = vand.u32 %v1977, 4294901760
        %3120 = vmatmul.mubr.f32.gmra.mrb[0].mxu0 %v3119
        %v3121 = vpop.f32.mrb[0].mxu0
        %v3122 = vadd.f32 %v2953, %v3121
        %v3123 = vpop.f32.mrb[0].mxu0
        %3124 = vmatprep.mubr.f32.mxu0 0.0
        %v3125 = vand.u32 %v1980, 4294901760
        %3126 = vmatmul.mubr.f32.gmra.mrb[0].mxu0 %v3125
        %v3127 = vpop.f32.mrb[0].mxu0
        %v3128 = vadd.f32 %v2959, %v3127
        %v3129 = vpop.f32.mrb[0].mxu0
        %3130 = vmatprep.mubr.f32.mxu0 0.0
        %v3131 = vand.u32 %v1983, 4294901760
        %3132 = vmatmul.mubr.f32.gmra.mrb[0].mxu0 %v3131
        %v3133 = vpop.f32.mrb[0].mxu0
        %v3134 = vadd.f32 %v2965, %v3133
        %v3135 = vpop.f32.mrb[0].mxu0
        %3136 = vmatprep.mubr.f32.mxu0 0.0
        %v3137 = vand.u32 %v1986, 4294901760
        %3138 = vmatmul.mubr.f32.gmra.mrb[0].mxu0 %v3137
        %v3139 = vpop.f32.mrb[0].mxu0
        %v3140 = vadd.f32 %v2971, %v3139
        %v3141 = vpop.f32.mrb[0].mxu0
        %3142 = vmatprep.mubr.f32.mxu0 0.0
        %v3143 = vand.u32 %v1989, 4294901760
        %3144 = vmatmul.mubr.f32.gmra.mrb[0].mxu0 %v3143
        %v3145 = vpop.f32.mrb[0].mxu0
        %v3146 = vadd.f32 %v2977, %v3145
        %v3147 = vpop.f32.mrb[0].mxu0
        %3148 = vmatprep.mubr.f32.mxu0 0.0
        %v3149 = vand.u32 %v1992, 4294901760
        %3150 = vmatmul.mubr.f32.gmra.mrb[0].mxu0 %v3149
        %v3151 = vpop.f32.mrb[0].mxu0
        %v3152 = vadd.f32 %v2983, %v3151
        %v3153 = vpop.f32.mrb[0].mxu0
        %3154 = vmatprep.mubr.f32.mxu0 0.0
        %v3155 = vand.u32 %v1995, 4294901760
        %3156 = vmatmul.mubr.f32.gmra.mrb[0].mxu0 %v3155
        %v3157 = vpop.f32.mrb[0].mxu0
        %v3158 = vadd.f32 %v2989, %v3157
        %v3159 = vpop.f32.mrb[0].mxu0
        %3160 = vmatprep.mubr.f32.mxu0 0.0
        %v3161 = vand.u32 %v1998, 4294901760
        %3162 = vmatmul.mubr.f32.gmra.mrb[0].mxu0 %v3161
        %v3163 = vpop.f32.mrb[0].mxu0
        %v3164 = vadd.f32 %v2995, %v3163
        %v3165 = vpop.f32.mrb[0].mxu0
        %3166 = vmatprep.mubr.f32.mxu0 0.0
        %v3167 = vand.u32 %v2001, 4294901760
        %3168 = vmatmul.mubr.f32.gmra.mrb[0].mxu0 %v3167
        %v3169 = vpop.f32.mrb[0].mxu0
        %v3170 = vadd.f32 %v3001, %v3169
        %v3171 = vpop.f32.mrb[0].mxu0
        %3172 = vmatprep.mubr.f32.mxu0 0.0
        %v3173 = vand.u32 %v2004, 4294901760
        %3174 = vmatmul.mubr.f32.gmra.mrb[0].mxu0 %v3173
        %v3175 = vpop.f32.mrb[0].mxu0
        %v3176 = vadd.f32 %v3007, %v3175
        %v3177 = vpop.f32.mrb[0].mxu0
        %3178 = vmatprep.mubr.f32.mxu0 0.0
        %v3179 = vand.u32 %v2007, 4294901760
        %3180 = vmatmul.mubr.f32.gmra.mrb[0].mxu0 %v3179
        %v3181 = vpop.f32.mrb[0].mxu0
        %v3182 = vadd.f32 %v3013, %v3181
        %v3183 = vpop.f32.mrb[0].mxu0
        %3184 = vmatprep.mubr.f32.mxu0 0.0
        %v3185 = vand.u32 %v2010, 4294901760
        %3186 = vmatmul.mubr.f32.gmra.mrb[0].mxu0 %v3185
        %v3187 = vpop.f32.mrb[0].mxu0
        %v3188 = vadd.f32 %v3019, %v3187
        %v3189 = vpop.f32.mrb[0].mxu0
        %3190 = vmatprep.mubr.f32.mxu0 0.0
        %v3191 = vand.u32 %v2013, 4294901760
        %3192 = vmatmul.mubr.f32.gmra.mrb[0].mxu0 %v3191
        %v3193 = vpop.f32.mrb[0].mxu0
        %v3194 = vadd.f32 %v3025, %v3193
        %v3195 = vpop.f32.mrb[0].mxu0
        %3196 = vdwg.mxu0
        %3197 = vst [vmem:[%s164] sm:$0xff] %v3104
        %3198 = vst [vmem:[%s164 + $0x8] sm:$0xff] %v3110
        %3199 = vst [vmem:[%s164 + $0x10] sm:$0xff] %v3116
        %3200 = vst [vmem:[%s164 + $0x18] sm:$0xff] %v3122
        %3201 = vst [vmem:[%s164 + $0x20] sm:$0xff] %v3128
        %3202 = vst [vmem:[%s164 + $0x28] sm:$0xff] %v3134
        %3203 = vst [vmem:[%s164 + $0x30] sm:$0xff] %v3140
        %3204 = vst [vmem:[%s164 + $0x38] sm:$0xff] %v3146
        %3205 = vst [vmem:[%s164 + $0x40] sm:$0xff] %v3152
        %3206 = vst [vmem:[%s164 + $0x48] sm:$0xff] %v3158
        %3207 = vst [vmem:[%s164 + $0x50] sm:$0xff] %v3164
        %3208 = vst [vmem:[%s164 + $0x58] sm:$0xff] %v3170
        %3209 = vst [vmem:[%s164 + $0x60] sm:$0xff] %v3176
        %3210 = vst [vmem:[%s164 + $0x68] sm:$0xff] %v3182
        %3211 = vst [vmem:[%s164 + $0x70] sm:$0xff] %v3188
        %3212 = vst [vmem:[%s164 + $0x78] sm:$0xff] %v3194
        %s3213 = sand.u32 %s93, 1
        %s3214 = scalar_lea.sflag [#allocation3], %s3213
        %s3215 = sand.u32 %s93, 1
        %s3216 = smul.addr %s3215, 128
        %s3217 = scalar_lea.vmem [#allocation2], %s3216
        // Predicated region
        $region33: #{tpu_custom_call.1} parent=31 // pred_check
          %p3218 = pneg %p103
        $region34: #{tpu_custom_call.1} parent=31 // pred_check_branch
          %3220 = sbr.rel (%p3218) target = $region36
        $region35: #{tpu_custom_call.1} parent=31 // pred_region
          %s3221 = smul.u32 16, %s17
          %s3223 = ssub.s32 2048, 2048
          %3224 = vsyncadd %s3214, %s3223
          %s3225 = smul.addr %s3221, 128
          %s3226 = scalar_lea.hbm %s3, %s3225
          %s3227 = sshll.u32 %s3217, 4
          %s3228 = int_to_ptr.vmem [resolvable:$true] %s3227
          %3233 = dma.vmem_to_hbm [thread:$0]  %s3228, 2048, %s3226, %s3214, 128, 128, 8
        $region36: #{tpu_custom_call.1} parent=31 // pred_fallthru
          _
      $region32: #{tpu_custom_call.1} parent=5 // pred_fallthru
        _
      %p3234 = scmp.le.s32.totalorder 2, %s12
      // Predicated region
      $region37: #{tpu_custom_call.1} parent=5 // pred_check
        %p3235 = pneg %p3234
      $region38: #{tpu_custom_call.1} parent=5 // pred_check_branch
        %3237 = sbr.rel (%p3235) target = $region40
      $region39: #{tpu_custom_call.1} parent=5 // pred_region
        %s3238 = ssub.s32 %s12, 2
        // Predicated region
        $region41: #{tpu_custom_call.1} parent=39 // pred_check
          %p3239 = pneg %p109
        $region42: #{tpu_custom_call.1} parent=39 // pred_check_branch
          %3241 = sbr.rel (%p3239) target = $region44
        $region43: #{tpu_custom_call.1} parent=39 // pred_region
          %s3242 = sand.u32 %s94, 1
          %s3243 = scalar_lea.sflag [#allocation3], %s3242
          %s3244 = sand.u32 %s94, 1
          %s3245 = smul.addr %s3244, 128
          %s3246 = scalar_lea.vmem [#allocation2], %s3245
          %3247 = dma.done %s3243, 2048
        $region44: #{tpu_custom_call.1} parent=39 // pred_fallthru
          _
      $region40: #{tpu_custom_call.1} parent=5 // pred_fallthru
        _
    $region6: #{tpu_custom_call.1} parent=1 // loop_footer
      %s16 = sadd.s32 1, %s12
    $region7: #{tpu_custom_call.1} parent=1 // loop_footer_branch
      %11 = sbr.rel target = $region3
    $region8: #{tpu_custom_call.1} parent=1 // loop_exit
      _
    %3248 = vsyncpa [#allocation3], 1
    %s3249 = scalar_lea.sflag [#allocation3], 1
    %3250 = vsyncpa %s3249, 1

</llo_original>
